<compile_context>
chip_gen: v5e
topology: v5e:2x2
jax: 0.10.0
libtpu: 0.0.40
codegen_flags: <defaults>
</compile_context>

<pallas_src>
import jax
import jax.numpy as jnp
from jax import lax
from jax.experimental import pallas as pl
from jax.experimental.pallas import tpu as pltpu


def _lstm_kernel(x_ref,        # (T*B, I)   bf16  flattened inputs (seq-major)
                 wih_ref,      # (4, I, H)  bf16  per-gate input weights (pre-transposed)
                 whh_ref,      # (4, H, H)  bf16  per-gate recurrent weights (pre-transposed)
                 b_ref,        # (4, 1, H)  f32   per-gate fused bias (b_ih + b_hh)
                 out_ref,      # (T, B, H)  f32   all hidden states
                 cn_ref,       # (1, B, H)  f32   final cell state
                 xg_ref):      # (4, T*B, H) f32  VMEM scratch: precomputed input gates
    T, B, H = out_ref.shape

    # ---- Prologue (off the serial critical path): input projection for all timesteps ----
    x_all = x_ref[...]                                   # (T*B, I) bf16, loaded once
    for g in range(4):                                   # static 4-way unroll, one matmul per gate
        xg_ref[g] = (jnp.dot(x_all, wih_ref[g],
                             preferred_element_type=jnp.float32)
                     + b_ref[g])                         # (T*B, H) f32

    # Hoist recurrent weight loads out of the time loop (JAX does not CSE inside loops).
    w_i = whh_ref[0]
    w_f = whh_ref[1]
    w_g = whh_ref[2]
    w_o = whh_ref[3]

    def step(t, carry):
        h, c = carry                                     # (B, H) f32 state, kept in vregs
        hb = h.astype(jnp.bfloat16)                      # bf16 operand for the MXU
        row = pl.multiple_of(t * B, B)
        g_i = xg_ref[0, pl.ds(row, B), :] + jnp.dot(hb, w_i, preferred_element_type=jnp.float32)
        g_f = xg_ref[1, pl.ds(row, B), :] + jnp.dot(hb, w_f, preferred_element_type=jnp.float32)
        g_g = xg_ref[2, pl.ds(row, B), :] + jnp.dot(hb, w_g, preferred_element_type=jnp.float32)
        g_o = xg_ref[3, pl.ds(row, B), :] + jnp.dot(hb, w_o, preferred_element_type=jnp.float32)
        # Gate nonlinearities and state update in f32 (PyTorch gate order i, f, g, o).
        i_gate = jax.nn.sigmoid(g_i)
        f_gate = jax.nn.sigmoid(g_f)
        g_gate = jnp.tanh(g_g)
        o_gate = jax.nn.sigmoid(g_o)
        c_new = f_gate * c + i_gate * g_gate
        h_new = o_gate * jnp.tanh(c_new)
        out_ref[t] = h_new.astype(out_ref.dtype)         # store into resident output block
        return (h_new, c_new)

    # PyTorch nn.LSTM zero-initializes (h_0, c_0) when hx is not provided.
    h0 = jnp.zeros((B, H), jnp.float32)
    c0 = jnp.zeros((B, H), jnp.float32)
    _, c_fin = lax.fori_loop(0, T, step, (h0, c0), unroll=True)
    cn_ref[0] = c_fin.astype(cn_ref.dtype)


def lstm_encoder_forward(x, w_ih, w_hh, b_ih, b_hh):
    """x: (T, B, I) float32.
    w_ih: (4H, I), w_hh: (4H, H), b_ih/b_hh: (4H,)  (PyTorch nn.LSTM parameter layout).
    Returns (lstm_out (T, B, H), (h_n (1, B, H), c_n (1, B, H)))."""
    T, B, I = x.shape
    H = w_hh.shape[1]

    # Per-gate, transposed, bf16 weights (PyTorch gate order i, f, g, o along dim 0).
    wih_g = jnp.transpose(w_ih.reshape(4, H, I), (0, 2, 1)).astype(jnp.bfloat16)  # (4, I, H)
    whh_g = jnp.transpose(w_hh.reshape(4, H, H), (0, 2, 1)).astype(jnp.bfloat16)  # (4, H, H)
    b_g = (b_ih + b_hh).reshape(4, 1, H).astype(jnp.float32)                      # (4, 1, H)
    x_flat = x.reshape(T * B, I).astype(jnp.bfloat16)                             # (T*B, I)

    lstm_out, c_n = pl.pallas_call(
        _lstm_kernel,
        out_shape=(
            jax.ShapeDtypeStruct((T, B, H), x.dtype),
            jax.ShapeDtypeStruct((1, B, H), x.dtype),
        ),
        grid=(1,),   # single invocation: whole problem (< ~100 KiB) is resident in VMEM
        in_specs=[
            pl.BlockSpec((T * B, I), lambda i: (0, 0)),
            pl.BlockSpec((4, I, H), lambda i: (0, 0, 0)),
            pl.BlockSpec((4, H, H), lambda i: (0, 0, 0)),
            pl.BlockSpec((4, 1, H), lambda i: (0, 0, 0)),
        ],
        out_specs=[
            pl.BlockSpec((T, B, H), lambda i: (0, 0, 0)),
            pl.BlockSpec((1, B, H), lambda i: (0, 0, 0)),
        ],
        scratch_shapes=[pltpu.VMEM((4, T * B, H), jnp.float32)],
        compiler_params=pltpu.CompilerParams(
            dimension_semantics=("arbitrary",)),
    )(x_flat, wih_g, whh_g, b_g)

    # h_n is simply the last timestep's hidden state -- no separate kernel output needed.
    h_n = lstm_out[T - 1:T]
    return lstm_out, (h_n, c_n)


def _lstm_reference(x, w_ih, w_hh, b_ih, b_hh, matmul_dtype=jnp.float32):
    """Pure-JAX reference for PyTorch nn.LSTM (num_layers=1).  `matmul_dtype` lets the
    reference mimic the kernel's bf16 matmul operands (f32 accumulation, f32 elementwise)."""
    T, B, I = x.shape
    H = w_hh.shape[1]
    b = b_ih + b_hh
    w_ih_t = w_ih.T.astype(matmul_dtype)
    w_hh_t = w_hh.T.astype(matmul_dtype)

    def step(carry, x_t):
        h, c = carry
        gates = (jnp.dot(x_t.astype(matmul_dtype), w_ih_t,
                         preferred_element_type=jnp.float32)
                 + jnp.dot(h.astype(matmul_dtype), w_hh_t,
                           preferred_element_type=jnp.float32)
                 + b)
        i = jax.nn.sigmoid(gates[:, 0 * H:1 * H])
        f = jax.nn.sigmoid(gates[:, 1 * H:2 * H])
        g = jnp.tanh(gates[:, 2 * H:3 * H])
        o = jax.nn.sigmoid(gates[:, 3 * H:4 * H])
        c_new = f * c + i * g
        h_new = o * jnp.tanh(c_new)
        return (h_new, c_new), h_new

    h0 = jnp.zeros((B, H), jnp.float32)
    c0 = jnp.zeros((B, H), jnp.float32)
    (h_n, c_n), outs = jax.lax.scan(step, (h0, c0), x)
    return outs, (h_n[None], c_n[None])


if __name__ == "__main__":
    # Small shapes consistent with the module: seq_len=8, batch=8, input_size=16, hidden=32
    SEQ, BATCH, INPUT_SIZE, HIDDEN = 8, 8, 16, 32

    key = jax.random.PRNGKey(0)
    kx, k1, k2, k3, k4 = jax.random.split(key, 5)

    # Deterministic synthetic parameters (PyTorch LSTM parameter shapes, uniform init scale).
    scale = 1.0 / jnp.sqrt(HIDDEN)
    x = jax.random.normal(kx, (SEQ, BATCH, INPUT_SIZE), jnp.float32)
    w_ih = jax.random.uniform(k1, (4 * HIDDEN, INPUT_SIZE), jnp.float32, -scale, scale)
    w_hh = jax.random.uniform(k2, (4 * HIDDEN, HIDDEN), jnp.float32, -scale, scale)
    b_ih = jax.random.uniform(k3, (4 * HIDDEN,), jnp.float32, -scale, scale)
    b_hh = jax.random.uniform(k4, (4 * HIDDEN,), jnp.float32, -scale, scale)

    lstm_out, (h_n, c_n) = jax.jit(lstm_encoder_forward)(x, w_ih, w_hh, b_ih, b_hh)
    jax.block_until_ready((lstm_out, h_n, c_n))

    assert lstm_out.shape == (SEQ, BATCH, HIDDEN)
    assert h_n.shape == (1, BATCH, HIDDEN) and c_n.shape == (1, BATCH, HIDDEN)

    # Primary check: reference with the SAME bf16 matmul operands (f32 accumulation,
    # f32 elementwise) -- should agree up to accumulation-order noise.
    ref_out, (ref_h, ref_c) = _lstm_reference(x, w_ih, w_hh, b_ih, b_hh,
                                              matmul_dtype=jnp.bfloat16)
    assert jnp.allclose(lstm_out, ref_out, atol=5e-3, rtol=5e-3)
    assert jnp.allclose(h_n, ref_h, atol=5e-3, rtol=5e-3)
    assert jnp.allclose(c_n, ref_c, atol=5e-3, rtol=5e-3)

    # Sanity check vs. the full-f32 PyTorch-equation reference (bf16 matmul operands add a
    # small, expected error through the recurrence).
    f32_out, (f32_h, f32_c) = _lstm_reference(x, w_ih, w_hh, b_ih, b_hh,
                                              matmul_dtype=jnp.float32)
    assert jnp.allclose(lstm_out, f32_out, atol=5e-2, rtol=5e-2)
    assert jnp.allclose(h_n, f32_h, atol=5e-2, rtol=5e-2)
    assert jnp.allclose(c_n, f32_c, atol=5e-2, rtol=5e-2)

    print("KERNEL_OK")
</pallas_src>

<mosaic_0001>
module attributes {stable_mosaic.version = 11 : i64} {
  func.func @_lstm_kernel(%arg0: i32, %arg1: memref<64x16xbf16, #tpu.memory_space<vmem>>, %arg2: memref<4x16x32xbf16, #tpu.memory_space<vmem>>, %arg3: memref<4x32x32xbf16, #tpu.memory_space<vmem>>, %arg4: memref<4x1x32xf32, #tpu.memory_space<vmem>>, %arg5: memref<8x8x32xf32, #tpu.memory_space<vmem>>, %arg6: memref<1x8x32xf32, #tpu.memory_space<vmem>>, %arg7: memref<4x64x32xf32, #tpu.memory_space<vmem>>) attributes {dimension_semantics = [#tpu.dimension_semantics<arbitrary>], iteration_bounds = array<i64: 1>, scalar_prefetch = 0 : i64, scratch_operands = 1 : i64, tpu.core_type = #tpu.core_type<tc>, window_params = [{pipeline_mode = #tpu.pipeline_mode<synchronous>, transform_indices = @transform_0, window_bounds = array<i64: 64, 16>}, {pipeline_mode = #tpu.pipeline_mode<synchronous>, transform_indices = @transform_1, window_bounds = array<i64: 4, 16, 32>}, {pipeline_mode = #tpu.pipeline_mode<synchronous>, transform_indices = @transform_2, window_bounds = array<i64: 4, 32, 32>}, {pipeline_mode = #tpu.pipeline_mode<synchronous>, transform_indices = @transform_3, window_bounds = array<i64: 4, 1, 32>}, {pipeline_mode = #tpu.pipeline_mode<synchronous>, transform_indices = @transform_4, window_bounds = array<i64: 8, 8, 32>}, {pipeline_mode = #tpu.pipeline_mode<synchronous>, transform_indices = @transform_5, window_bounds = array<i64: 1, 8, 32>}]} {
    %c0 = arith.constant 0 : index
    %c0_0 = arith.constant 0 : index
    %0 = vector.load %arg1[%c0, %c0_0] : memref<64x16xbf16, #tpu.memory_space<vmem>>, vector<64x16xbf16>
    %c0_1 = arith.constant 0 : index
    %c0_2 = arith.constant 0 : index
    %c0_3 = arith.constant 0 : index
    %1 = vector.load %arg2[%c0_1, %c0_2, %c0_3] : memref<4x16x32xbf16, #tpu.memory_space<vmem>>, vector<1x16x32xbf16>
    %2 = vector.shape_cast %1 : vector<1x16x32xbf16> to vector<16x32xbf16>
    %cst = arith.constant dense<0.000000e+00> : vector<64x32xf32>
    %3 = tpu.matmul %0, %2, %cst {dimension_numbers = #tpu.dot_dimension_numbers<[1], [0], [0], [1], [0, 0, 1, 1], [], []>} : vector<64x16xbf16>, vector<16x32xbf16>, vector<64x32xf32> -> vector<64x32xf32>
    %c0_4 = arith.constant 0 : index
    %c0_5 = arith.constant 0 : index
    %c0_6 = arith.constant 0 : index
    %4 = vector.load %arg4[%c0_4, %c0_5, %c0_6] : memref<4x1x32xf32, #tpu.memory_space<vmem>>, vector<1x1x32xf32>
    %5 = vector.shape_cast %4 : vector<1x1x32xf32> to vector<1x32xf32>
    %6 = vector.broadcast %5 : vector<1x32xf32> to vector<64x32xf32>
    %7 = arith.addf %3, %6 : vector<64x32xf32>
    %c0_7 = arith.constant 0 : index
    %c0_8 = arith.constant 0 : index
    %c0_9 = arith.constant 0 : index
    %8 = vector.load %arg7[%c0_7, %c0_8, %c0_9] : memref<4x64x32xf32, #tpu.memory_space<vmem>>, vector<1x64x32xf32>
    %9 = vector.shape_cast %8 : vector<1x64x32xf32> to vector<64x32xf32>
    %10 = vector.shape_cast %7 : vector<64x32xf32> to vector<1x64x32xf32>
    tpu.vector_store %arg7[%c0_7, %c0_8, %c0_9], %10 {strides = array<i32>} : memref<4x64x32xf32, #tpu.memory_space<vmem>>, vector<1x64x32xf32>,
    %c1 = arith.constant 1 : index
    %c0_10 = arith.constant 0 : index
    %c0_11 = arith.constant 0 : index
    %11 = vector.load %arg2[%c1, %c0_10, %c0_11] : memref<4x16x32xbf16, #tpu.memory_space<vmem>>, vector<1x16x32xbf16>
    %12 = vector.shape_cast %11 : vector<1x16x32xbf16> to vector<16x32xbf16>
    %cst_12 = arith.constant dense<0.000000e+00> : vector<64x32xf32>
    %13 = tpu.matmul %0, %12, %cst_12 {dimension_numbers = #tpu.dot_dimension_numbers<[1], [0], [0], [1], [0, 0, 1, 1], [], []>} : vector<64x16xbf16>, vector<16x32xbf16>, vector<64x32xf32> -> vector<64x32xf32>
    %c1_13 = arith.constant 1 : index
    %c0_14 = arith.constant 0 : index
    %c0_15 = arith.constant 0 : index
    %14 = vector.load %arg4[%c1_13, %c0_14, %c0_15] : memref<4x1x32xf32, #tpu.memory_space<vmem>>, vector<1x1x32xf32>
    %15 = vector.shape_cast %14 : vector<1x1x32xf32> to vector<1x32xf32>
    %16 = vector.broadcast %15 : vector<1x32xf32> to vector<64x32xf32>
    %17 = arith.addf %13, %16 : vector<64x32xf32>
    %c1_16 = arith.constant 1 : index
    %c0_17 = arith.constant 0 : index
    %c0_18 = arith.constant 0 : index
    %18 = vector.load %arg7[%c1_16, %c0_17, %c0_18] : memref<4x64x32xf32, #tpu.memory_space<vmem>>, vector<1x64x32xf32>
    %19 = vector.shape_cast %18 : vector<1x64x32xf32> to vector<64x32xf32>
    %20 = vector.shape_cast %17 : vector<64x32xf32> to vector<1x64x32xf32>
    tpu.vector_store %arg7[%c1_16, %c0_17, %c0_18], %20 {strides = array<i32>} : memref<4x64x32xf32, #tpu.memory_space<vmem>>, vector<1x64x32xf32>,
    %c2 = arith.constant 2 : index
    %c0_19 = arith.constant 0 : index
    %c0_20 = arith.constant 0 : index
    %21 = vector.load %arg2[%c2, %c0_19, %c0_20] : memref<4x16x32xbf16, #tpu.memory_space<vmem>>, vector<1x16x32xbf16>
    %22 = vector.shape_cast %21 : vector<1x16x32xbf16> to vector<16x32xbf16>
    %cst_21 = arith.constant dense<0.000000e+00> : vector<64x32xf32>
    %23 = tpu.matmul %0, %22, %cst_21 {dimension_numbers = #tpu.dot_dimension_numbers<[1], [0], [0], [1], [0, 0, 1, 1], [], []>} : vector<64x16xbf16>, vector<16x32xbf16>, vector<64x32xf32> -> vector<64x32xf32>
    %c2_22 = arith.constant 2 : index
    %c0_23 = arith.constant 0 : index
    %c0_24 = arith.constant 0 : index
    %24 = vector.load %arg4[%c2_22, %c0_23, %c0_24] : memref<4x1x32xf32, #tpu.memory_space<vmem>>, vector<1x1x32xf32>
    %25 = vector.shape_cast %24 : vector<1x1x32xf32> to vector<1x32xf32>
    %26 = vector.broadcast %25 : vector<1x32xf32> to vector<64x32xf32>
    %27 = arith.addf %23, %26 : vector<64x32xf32>
    %c2_25 = arith.constant 2 : index
    %c0_26 = arith.constant 0 : index
    %c0_27 = arith.constant 0 : index
    %28 = vector.load %arg7[%c2_25, %c0_26, %c0_27] : memref<4x64x32xf32, #tpu.memory_space<vmem>>, vector<1x64x32xf32>
    %29 = vector.shape_cast %28 : vector<1x64x32xf32> to vector<64x32xf32>
    %30 = vector.shape_cast %27 : vector<64x32xf32> to vector<1x64x32xf32>
    tpu.vector_store %arg7[%c2_25, %c0_26, %c0_27], %30 {strides = array<i32>} : memref<4x64x32xf32, #tpu.memory_space<vmem>>, vector<1x64x32xf32>,
    %c3 = arith.constant 3 : index
    %c0_28 = arith.constant 0 : index
    %c0_29 = arith.constant 0 : index
    %31 = vector.load %arg2[%c3, %c0_28, %c0_29] : memref<4x16x32xbf16, #tpu.memory_space<vmem>>, vector<1x16x32xbf16>
    %32 = vector.shape_cast %31 : vector<1x16x32xbf16> to vector<16x32xbf16>
    %cst_30 = arith.constant dense<0.000000e+00> : vector<64x32xf32>
    %33 = tpu.matmul %0, %32, %cst_30 {dimension_numbers = #tpu.dot_dimension_numbers<[1], [0], [0], [1], [0, 0, 1, 1], [], []>} : vector<64x16xbf16>, vector<16x32xbf16>, vector<64x32xf32> -> vector<64x32xf32>
    %c3_31 = arith.constant 3 : index
    %c0_32 = arith.constant 0 : index
    %c0_33 = arith.constant 0 : index
    %34 = vector.load %arg4[%c3_31, %c0_32, %c0_33] : memref<4x1x32xf32, #tpu.memory_space<vmem>>, vector<1x1x32xf32>
    %35 = vector.shape_cast %34 : vector<1x1x32xf32> to vector<1x32xf32>
    %36 = vector.broadcast %35 : vector<1x32xf32> to vector<64x32xf32>
    %37 = arith.addf %33, %36 : vector<64x32xf32>
    %c3_34 = arith.constant 3 : index
    %c0_35 = arith.constant 0 : index
    %c0_36 = arith.constant 0 : index
    %38 = vector.load %arg7[%c3_34, %c0_35, %c0_36] : memref<4x64x32xf32, #tpu.memory_space<vmem>>, vector<1x64x32xf32>
    %39 = vector.shape_cast %38 : vector<1x64x32xf32> to vector<64x32xf32>
    %40 = vector.shape_cast %37 : vector<64x32xf32> to vector<1x64x32xf32>
    tpu.vector_store %arg7[%c3_34, %c0_35, %c0_36], %40 {strides = array<i32>} : memref<4x64x32xf32, #tpu.memory_space<vmem>>, vector<1x64x32xf32>,
    %c0_37 = arith.constant 0 : index
    %c0_38 = arith.constant 0 : index
    %c0_39 = arith.constant 0 : index
    %41 = vector.load %arg3[%c0_37, %c0_38, %c0_39] : memref<4x32x32xbf16, #tpu.memory_space<vmem>>, vector<1x32x32xbf16>
    %42 = vector.shape_cast %41 : vector<1x32x32xbf16> to vector<32x32xbf16>
    %c1_40 = arith.constant 1 : index
    %c0_41 = arith.constant 0 : index
    %c0_42 = arith.constant 0 : index
    %43 = vector.load %arg3[%c1_40, %c0_41, %c0_42] : memref<4x32x32xbf16, #tpu.memory_space<vmem>>, vector<1x32x32xbf16>
    %44 = vector.shape_cast %43 : vector<1x32x32xbf16> to vector<32x32xbf16>
    %c2_43 = arith.constant 2 : index
    %c0_44 = arith.constant 0 : index
    %c0_45 = arith.constant 0 : index
    %45 = vector.load %arg3[%c2_43, %c0_44, %c0_45] : memref<4x32x32xbf16, #tpu.memory_space<vmem>>, vector<1x32x32xbf16>
    %46 = vector.shape_cast %45 : vector<1x32x32xbf16> to vector<32x32xbf16>
    %c3_46 = arith.constant 3 : index
    %c0_47 = arith.constant 0 : index
    %c0_48 = arith.constant 0 : index
    %47 = vector.load %arg3[%c3_46, %c0_47, %c0_48] : memref<4x32x32xbf16, #tpu.memory_space<vmem>>, vector<1x32x32xbf16>
    %48 = vector.shape_cast %47 : vector<1x32x32xbf16> to vector<32x32xbf16>
    %cst_49 = arith.constant 0.000000e+00 : f32
    %49 = vector.broadcast %cst_49 : f32 to vector<8x32xf32>
    %cst_50 = arith.constant 0.000000e+00 : f32
    %50 = vector.broadcast %cst_50 : f32 to vector<8x32xf32>
    %c0_i32 = arith.constant 0 : i32
    %51 = arith.truncf %49 : vector<8x32xf32> to vector<8x32xbf16>
    %c8_i32 = arith.constant 8 : i32
    %52 = arith.muli %c0_i32, %c8_i32 : i32
    %53 = tpu.assume_multiple %52, 8 : i32
    %c0_51 = arith.constant 0 : index
    %54 = arith.index_cast %53 : i32 to index
    %c0_52 = arith.constant 0 : index
    %55 = vector.load %arg7[%c0_51, %54, %c0_52] : memref<4x64x32xf32, #tpu.memory_space<vmem>>, vector<1x8x32xf32>
    %56 = vector.shape_cast %55 : vector<1x8x32xf32> to vector<8x32xf32>
    %cst_53 = arith.constant dense<0.000000e+00> : vector<8x32xf32>
    %57 = tpu.matmul %51, %42, %cst_53 {dimension_numbers = #tpu.dot_dimension_numbers<[1], [0], [0], [1], [0, 0, 1, 1], [], []>} : vector<8x32xbf16>, vector<32x32xbf16>, vector<8x32xf32> -> vector<8x32xf32>
    %58 = arith.addf %56, %57 : vector<8x32xf32>
    %c1_54 = arith.constant 1 : index
    %59 = arith.index_cast %53 : i32 to index
    %c0_55 = arith.constant 0 : index
    %60 = vector.load %arg7[%c1_54, %59, %c0_55] : memref<4x64x32xf32, #tpu.memory_space<vmem>>, vector<1x8x32xf32>
    %61 = vector.shape_cast %60 : vector<1x8x32xf32> to vector<8x32xf32>
    %cst_56 = arith.constant dense<0.000000e+00> : vector<8x32xf32>
    %62 = tpu.matmul %51, %44, %cst_56 {dimension_numbers = #tpu.dot_dimension_numbers<[1], [0], [0], [1], [0, 0, 1, 1], [], []>} : vector<8x32xbf16>, vector<32x32xbf16>, vector<8x32xf32> -> vector<8x32xf32>
    %63 = arith.addf %61, %62 : vector<8x32xf32>
    %c2_57 = arith.constant 2 : index
    %64 = arith.index_cast %53 : i32 to index
    %c0_58 = arith.constant 0 : index
    %65 = vector.load %arg7[%c2_57, %64, %c0_58] : memref<4x64x32xf32, #tpu.memory_space<vmem>>, vector<1x8x32xf32>
    %66 = vector.shape_cast %65 : vector<1x8x32xf32> to vector<8x32xf32>
    %cst_59 = arith.constant dense<0.000000e+00> : vector<8x32xf32>
    %67 = tpu.matmul %51, %46, %cst_59 {dimension_numbers = #tpu.dot_dimension_numbers<[1], [0], [0], [1], [0, 0, 1, 1], [], []>} : vector<8x32xbf16>, vector<32x32xbf16>, vector<8x32xf32> -> vector<8x32xf32>
    %68 = arith.addf %66, %67 : vector<8x32xf32>
    %c3_60 = arith.constant 3 : index
    %69 = arith.index_cast %53 : i32 to index
    %c0_61 = arith.constant 0 : index
    %70 = vector.load %arg7[%c3_60, %69, %c0_61] : memref<4x64x32xf32, #tpu.memory_space<vmem>>, vector<1x8x32xf32>
    %71 = vector.shape_cast %70 : vector<1x8x32xf32> to vector<8x32xf32>
    %cst_62 = arith.constant dense<0.000000e+00> : vector<8x32xf32>
    %72 = tpu.matmul %51, %48, %cst_62 {dimension_numbers = #tpu.dot_dimension_numbers<[1], [0], [0], [1], [0, 0, 1, 1], [], []>} : vector<8x32xbf16>, vector<32x32xbf16>, vector<8x32xf32> -> vector<8x32xf32>
    %73 = arith.addf %71, %72 : vector<8x32xf32>
    %74 = arith.negf %58 : vector<8x32xf32>
    %75 = math.exp %74 : vector<8x32xf32>
    %cst_63 = arith.constant 1.000000e+00 : f32
    %76 = vector.broadcast %cst_63 : f32 to vector<8x32xf32>
    %77 = arith.addf %76, %75 : vector<8x32xf32>
    %78 = arith.divf %76, %77 : vector<8x32xf32>
    %79 = arith.negf %63 : vector<8x32xf32>
    %80 = math.exp %79 : vector<8x32xf32>
    %cst_64 = arith.constant 1.000000e+00 : f32
    %81 = vector.broadcast %cst_64 : f32 to vector<8x32xf32>
    %82 = arith.addf %81, %80 : vector<8x32xf32>
    %83 = arith.divf %81, %82 : vector<8x32xf32>
    %84 = math.tanh %68 : vector<8x32xf32>
    %85 = arith.negf %73 : vector<8x32xf32>
    %86 = math.exp %85 : vector<8x32xf32>
    %cst_65 = arith.constant 1.000000e+00 : f32
    %87 = vector.broadcast %cst_65 : f32 to vector<8x32xf32>
    %88 = arith.addf %87, %86 : vector<8x32xf32>
    %89 = arith.divf %87, %88 : vector<8x32xf32>
    %90 = arith.mulf %83, %50 : vector<8x32xf32>
    %91 = arith.mulf %78, %84 : vector<8x32xf32>
    %92 = arith.addf %90, %91 : vector<8x32xf32>
    %93 = math.tanh %92 : vector<8x32xf32>
    %94 = arith.mulf %89, %93 : vector<8x32xf32>
    %95 = arith.index_cast %c0_i32 : i32 to index
    %c0_66 = arith.constant 0 : index
    %c0_67 = arith.constant 0 : index
    %96 = vector.load %arg5[%95, %c0_66, %c0_67] : memref<8x8x32xf32, #tpu.memory_space<vmem>>, vector<1x8x32xf32>
    %97 = vector.shape_cast %96 : vector<1x8x32xf32> to vector<8x32xf32>
    %98 = vector.shape_cast %94 : vector<8x32xf32> to vector<1x8x32xf32>
    tpu.vector_store %arg5[%95, %c0_66, %c0_67], %98 {strides = array<i32>} : memref<8x8x32xf32, #tpu.memory_space<vmem>>, vector<1x8x32xf32>,
    %c1_i32 = arith.constant 1 : i32
    %99 = arith.truncf %94 : vector<8x32xf32> to vector<8x32xbf16>
    %c8_i32_68 = arith.constant 8 : i32
    %100 = arith.muli %c1_i32, %c8_i32_68 : i32
    %101 = tpu.assume_multiple %100, 8 : i32
    %c0_69 = arith.constant 0 : index
    %102 = arith.index_cast %101 : i32 to index
    %c0_70 = arith.constant 0 : index
    %103 = vector.load %arg7[%c0_69, %102, %c0_70] : memref<4x64x32xf32, #tpu.memory_space<vmem>>, vector<1x8x32xf32>
    %104 = vector.shape_cast %103 : vector<1x8x32xf32> to vector<8x32xf32>
    %cst_71 = arith.constant dense<0.000000e+00> : vector<8x32xf32>
    %105 = tpu.matmul %99, %42, %cst_71 {dimension_numbers = #tpu.dot_dimension_numbers<[1], [0], [0], [1], [0, 0, 1, 1], [], []>} : vector<8x32xbf16>, vector<32x32xbf16>, vector<8x32xf32> -> vector<8x32xf32>
    %106 = arith.addf %104, %105 : vector<8x32xf32>
    %c1_72 = arith.constant 1 : index
    %107 = arith.index_cast %101 : i32 to index
    %c0_73 = arith.constant 0 : index
    %108 = vector.load %arg7[%c1_72, %107, %c0_73] : memref<4x64x32xf32, #tpu.memory_space<vmem>>, vector<1x8x32xf32>
    %109 = vector.shape_cast %108 : vector<1x8x32xf32> to vector<8x32xf32>
    %cst_74 = arith.constant dense<0.000000e+00> : vector<8x32xf32>
    %110 = tpu.matmul %99, %44, %cst_74 {dimension_numbers = #tpu.dot_dimension_numbers<[1], [0], [0], [1], [0, 0, 1, 1], [], []>} : vector<8x32xbf16>, vector<32x32xbf16>, vector<8x32xf32> -> vector<8x32xf32>
    %111 = arith.addf %109, %110 : vector<8x32xf32>
    %c2_75 = arith.constant 2 : index
    %112 = arith.index_cast %101 : i32 to index
    %c0_76 = arith.constant 0 : index
    %113 = vector.load %arg7[%c2_75, %112, %c0_76] : memref<4x64x32xf32, #tpu.memory_space<vmem>>, vector<1x8x32xf32>
    %114 = vector.shape_cast %113 : vector<1x8x32xf32> to vector<8x32xf32>
    %cst_77 = arith.constant dense<0.000000e+00> : vector<8x32xf32>
    %115 = tpu.matmul %99, %46, %cst_77 {dimension_numbers = #tpu.dot_dimension_numbers<[1], [0], [0], [1], [0, 0, 1, 1], [], []>} : vector<8x32xbf16>, vector<32x32xbf16>, vector<8x32xf32> -> vector<8x32xf32>
    %116 = arith.addf %114, %115 : vector<8x32xf32>
    %c3_78 = arith.constant 3 : index
    %117 = arith.index_cast %101 : i32 to index
    %c0_79 = arith.constant 0 : index
    %118 = vector.load %arg7[%c3_78, %117, %c0_79] : memref<4x64x32xf32, #tpu.memory_space<vmem>>, vector<1x8x32xf32>
    %119 = vector.shape_cast %118 : vector<1x8x32xf32> to vector<8x32xf32>
    %cst_80 = arith.constant dense<0.000000e+00> : vector<8x32xf32>
    %120 = tpu.matmul %99, %48, %cst_80 {dimension_numbers = #tpu.dot_dimension_numbers<[1], [0], [0], [1], [0, 0, 1, 1], [], []>} : vector<8x32xbf16>, vector<32x32xbf16>, vector<8x32xf32> -> vector<8x32xf32>
    %121 = arith.addf %119, %120 : vector<8x32xf32>
    %122 = arith.negf %106 : vector<8x32xf32>
    %123 = math.exp %122 : vector<8x32xf32>
    %cst_81 = arith.constant 1.000000e+00 : f32
    %124 = vector.broadcast %cst_81 : f32 to vector<8x32xf32>
    %125 = arith.addf %124, %123 : vector<8x32xf32>
    %126 = arith.divf %124, %125 : vector<8x32xf32>
    %127 = arith.negf %111 : vector<8x32xf32>
    %128 = math.exp %127 : vector<8x32xf32>
    %cst_82 = arith.constant 1.000000e+00 : f32
    %129 = vector.broadcast %cst_82 : f32 to vector<8x32xf32>
    %130 = arith.addf %129, %128 : vector<8x32xf32>
    %131 = arith.divf %129, %130 : vector<8x32xf32>
    %132 = math.tanh %116 : vector<8x32xf32>
    %133 = arith.negf %121 : vector<8x32xf32>
    %134 = math.exp %133 : vector<8x32xf32>
    %cst_83 = arith.constant 1.000000e+00 : f32
    %135 = vector.broadcast %cst_83 : f32 to vector<8x32xf32>
    %136 = arith.addf %135, %134 : vector<8x32xf32>
    %137 = arith.divf %135, %136 : vector<8x32xf32>
    %138 = arith.mulf %131, %92 : vector<8x32xf32>
    %139 = arith.mulf %126, %132 : vector<8x32xf32>
    %140 = arith.addf %138, %139 : vector<8x32xf32>
    %141 = math.tanh %140 : vector<8x32xf32>
    %142 = arith.mulf %137, %141 : vector<8x32xf32>
    %143 = arith.index_cast %c1_i32 : i32 to index
    %c0_84 = arith.constant 0 : index
    %c0_85 = arith.constant 0 : index
    %144 = vector.load %arg5[%143, %c0_84, %c0_85] : memref<8x8x32xf32, #tpu.memory_space<vmem>>, vector<1x8x32xf32>
    %145 = vector.shape_cast %144 : vector<1x8x32xf32> to vector<8x32xf32>
    %146 = vector.shape_cast %142 : vector<8x32xf32> to vector<1x8x32xf32>
    tpu.vector_store %arg5[%143, %c0_84, %c0_85], %146 {strides = array<i32>} : memref<8x8x32xf32, #tpu.memory_space<vmem>>, vector<1x8x32xf32>,
    %c2_i32 = arith.constant 2 : i32
    %147 = arith.truncf %142 : vector<8x32xf32> to vector<8x32xbf16>
    %c8_i32_86 = arith.constant 8 : i32
    %148 = arith.muli %c2_i32, %c8_i32_86 : i32
    %149 = tpu.assume_multiple %148, 8 : i32
    %c0_87 = arith.constant 0 : index
    %150 = arith.index_cast %149 : i32 to index
    %c0_88 = arith.constant 0 : index
    %151 = vector.load %arg7[%c0_87, %150, %c0_88] : memref<4x64x32xf32, #tpu.memory_space<vmem>>, vector<1x8x32xf32>
    %152 = vector.shape_cast %151 : vector<1x8x32xf32> to vector<8x32xf32>
    %cst_89 = arith.constant dense<0.000000e+00> : vector<8x32xf32>
    %153 = tpu.matmul %147, %42, %cst_89 {dimension_numbers = #tpu.dot_dimension_numbers<[1], [0], [0], [1], [0, 0, 1, 1], [], []>} : vector<8x32xbf16>, vector<32x32xbf16>, vector<8x32xf32> -> vector<8x32xf32>
    %154 = arith.addf %152, %153 : vector<8x32xf32>
    %c1_90 = arith.constant 1 : index
    %155 = arith.index_cast %149 : i32 to index
    %c0_91 = arith.constant 0 : index
    %156 = vector.load %arg7[%c1_90, %155, %c0_91] : memref<4x64x32xf32, #tpu.memory_space<vmem>>, vector<1x8x32xf32>
    %157 = vector.shape_cast %156 : vector<1x8x32xf32> to vector<8x32xf32>
    %cst_92 = arith.constant dense<0.000000e+00> : vector<8x32xf32>
    %158 = tpu.matmul %147, %44, %cst_92 {dimension_numbers = #tpu.dot_dimension_numbers<[1], [0], [0], [1], [0, 0, 1, 1], [], []>} : vector<8x32xbf16>, vector<32x32xbf16>, vector<8x32xf32> -> vector<8x32xf32>
    %159 = arith.addf %157, %158 : vector<8x32xf32>
    %c2_93 = arith.constant 2 : index
    %160 = arith.index_cast %149 : i32 to index
    %c0_94 = arith.constant 0 : index
    %161 = vector.load %arg7[%c2_93, %160, %c0_94] : memref<4x64x32xf32, #tpu.memory_space<vmem>>, vector<1x8x32xf32>
    %162 = vector.shape_cast %161 : vector<1x8x32xf32> to vector<8x32xf32>
    %cst_95 = arith.constant dense<0.000000e+00> : vector<8x32xf32>
    %163 = tpu.matmul %147, %46, %cst_95 {dimension_numbers = #tpu.dot_dimension_numbers<[1], [0], [0], [1], [0, 0, 1, 1], [], []>} : vector<8x32xbf16>, vector<32x32xbf16>, vector<8x32xf32> -> vector<8x32xf32>
    %164 = arith.addf %162, %163 : vector<8x32xf32>
    %c3_96 = arith.constant 3 : index
    %165 = arith.index_cast %149 : i32 to index
    %c0_97 = arith.constant 0 : index
    %166 = vector.load %arg7[%c3_96, %165, %c0_97] : memref<4x64x32xf32, #tpu.memory_space<vmem>>, vector<1x8x32xf32>
    %167 = vector.shape_cast %166 : vector<1x8x32xf32> to vector<8x32xf32>
    %cst_98 = arith.constant dense<0.000000e+00> : vector<8x32xf32>
    %168 = tpu.matmul %147, %48, %cst_98 {dimension_numbers = #tpu.dot_dimension_numbers<[1], [0], [0], [1], [0, 0, 1, 1], [], []>} : vector<8x32xbf16>, vector<32x32xbf16>, vector<8x32xf32> -> vector<8x32xf32>
    %169 = arith.addf %167, %168 : vector<8x32xf32>
    %170 = arith.negf %154 : vector<8x32xf32>
    %171 = math.exp %170 : vector<8x32xf32>
    %cst_99 = arith.constant 1.000000e+00 : f32
    %172 = vector.broadcast %cst_99 : f32 to vector<8x32xf32>
    %173 = arith.addf %172, %171 : vector<8x32xf32>
    %174 = arith.divf %172, %173 : vector<8x32xf32>
    %175 = arith.negf %159 : vector<8x32xf32>
    %176 = math.exp %175 : vector<8x32xf32>
    %cst_100 = arith.constant 1.000000e+00 : f32
    %177 = vector.broadcast %cst_100 : f32 to vector<8x32xf32>
    %178 = arith.addf %177, %176 : vector<8x32xf32>
    %179 = arith.divf %177, %178 : vector<8x32xf32>
    %180 = math.tanh %164 : vector<8x32xf32>
    %181 = arith.negf %169 : vector<8x32xf32>
    %182 = math.exp %181 : vector<8x32xf32>
    %cst_101 = arith.constant 1.000000e+00 : f32
    %183 = vector.broadcast %cst_101 : f32 to vector<8x32xf32>
    %184 = arith.addf %183, %182 : vector<8x32xf32>
    %185 = arith.divf %183, %184 : vector<8x32xf32>
    %186 = arith.mulf %179, %140 : vector<8x32xf32>
    %187 = arith.mulf %174, %180 : vector<8x32xf32>
    %188 = arith.addf %186, %187 : vector<8x32xf32>
    %189 = math.tanh %188 : vector<8x32xf32>
    %190 = arith.mulf %185, %189 : vector<8x32xf32>
    %191 = arith.index_cast %c2_i32 : i32 to index
    %c0_102 = arith.constant 0 : index
    %c0_103 = arith.constant 0 : index
    %192 = vector.load %arg5[%191, %c0_102, %c0_103] : memref<8x8x32xf32, #tpu.memory_space<vmem>>, vector<1x8x32xf32>
    %193 = vector.shape_cast %192 : vector<1x8x32xf32> to vector<8x32xf32>
    %194 = vector.shape_cast %190 : vector<8x32xf32> to vector<1x8x32xf32>
    tpu.vector_store %arg5[%191, %c0_102, %c0_103], %194 {strides = array<i32>} : memref<8x8x32xf32, #tpu.memory_space<vmem>>, vector<1x8x32xf32>,
    %c3_i32 = arith.constant 3 : i32
    %195 = arith.truncf %190 : vector<8x32xf32> to vector<8x32xbf16>
    %c8_i32_104 = arith.constant 8 : i32
    %196 = arith.muli %c3_i32, %c8_i32_104 : i32
    %197 = tpu.assume_multiple %196, 8 : i32
    %c0_105 = arith.constant 0 : index
    %198 = arith.index_cast %197 : i32 to index
    %c0_106 = arith.constant 0 : index
    %199 = vector.load %arg7[%c0_105, %198, %c0_106] : memref<4x64x32xf32, #tpu.memory_space<vmem>>, vector<1x8x32xf32>
    %200 = vector.shape_cast %199 : vector<1x8x32xf32> to vector<8x32xf32>
    %cst_107 = arith.constant dense<0.000000e+00> : vector<8x32xf32>
    %201 = tpu.matmul %195, %42, %cst_107 {dimension_numbers = #tpu.dot_dimension_numbers<[1], [0], [0], [1], [0, 0, 1, 1], [], []>} : vector<8x32xbf16>, vector<32x32xbf16>, vector<8x32xf32> -> vector<8x32xf32>
    %202 = arith.addf %200, %201 : vector<8x32xf32>
    %c1_108 = arith.constant 1 : index
    %203 = arith.index_cast %197 : i32 to index
    %c0_109 = arith.constant 0 : index
    %204 = vector.load %arg7[%c1_108, %203, %c0_109] : memref<4x64x32xf32, #tpu.memory_space<vmem>>, vector<1x8x32xf32>
    %205 = vector.shape_cast %204 : vector<1x8x32xf32> to vector<8x32xf32>
    %cst_110 = arith.constant dense<0.000000e+00> : vector<8x32xf32>
    %206 = tpu.matmul %195, %44, %cst_110 {dimension_numbers = #tpu.dot_dimension_numbers<[1], [0], [0], [1], [0, 0, 1, 1], [], []>} : vector<8x32xbf16>, vector<32x32xbf16>, vector<8x32xf32> -> vector<8x32xf32>
    %207 = arith.addf %205, %206 : vector<8x32xf32>
    %c2_111 = arith.constant 2 : index
    %208 = arith.index_cast %197 : i32 to index
    %c0_112 = arith.constant 0 : index
    %209 = vector.load %arg7[%c2_111, %208, %c0_112] : memref<4x64x32xf32, #tpu.memory_space<vmem>>, vector<1x8x32xf32>
    %210 = vector.shape_cast %209 : vector<1x8x32xf32> to vector<8x32xf32>
    %cst_113 = arith.constant dense<0.000000e+00> : vector<8x32xf32>
    %211 = tpu.matmul %195, %46, %cst_113 {dimension_numbers = #tpu.dot_dimension_numbers<[1], [0], [0], [1], [0, 0, 1, 1], [], []>} : vector<8x32xbf16>, vector<32x32xbf16>, vector<8x32xf32> -> vector<8x32xf32>
    %212 = arith.addf %210, %211 : vector<8x32xf32>
    %c3_114 = arith.constant 3 : index
    %213 = arith.index_cast %197 : i32 to index
    %c0_115 = arith.constant 0 : index
    %214 = vector.load %arg7[%c3_114, %213, %c0_115] : memref<4x64x32xf32, #tpu.memory_space<vmem>>, vector<1x8x32xf32>
    %215 = vector.shape_cast %214 : vector<1x8x32xf32> to vector<8x32xf32>
    %cst_116 = arith.constant dense<0.000000e+00> : vector<8x32xf32>
    %216 = tpu.matmul %195, %48, %cst_116 {dimension_numbers = #tpu.dot_dimension_numbers<[1], [0], [0], [1], [0, 0, 1, 1], [], []>} : vector<8x32xbf16>, vector<32x32xbf16>, vector<8x32xf32> -> vector<8x32xf32>
    %217 = arith.addf %215, %216 : vector<8x32xf32>
    %218 = arith.negf %202 : vector<8x32xf32>
    %219 = math.exp %218 : vector<8x32xf32>
    %cst_117 = arith.constant 1.000000e+00 : f32
    %220 = vector.broadcast %cst_117 : f32 to vector<8x32xf32>
    %221 = arith.addf %220, %219 : vector<8x32xf32>
    %222 = arith.divf %220, %221 : vector<8x32xf32>
    %223 = arith.negf %207 : vector<8x32xf32>
    %224 = math.exp %223 : vector<8x32xf32>
    %cst_118 = arith.constant 1.000000e+00 : f32
    %225 = vector.broadcast %cst_118 : f32 to vector<8x32xf32>
    %226 = arith.addf %225, %224 : vector<8x32xf32>
    %227 = arith.divf %225, %226 : vector<8x32xf32>
    %228 = math.tanh %212 : vector<8x32xf32>
    %229 = arith.negf %217 : vector<8x32xf32>
    %230 = math.exp %229 : vector<8x32xf32>
    %cst_119 = arith.constant 1.000000e+00 : f32
    %231 = vector.broadcast %cst_119 : f32 to vector<8x32xf32>
    %232 = arith.addf %231, %230 : vector<8x32xf32>
    %233 = arith.divf %231, %232 : vector<8x32xf32>
    %234 = arith.mulf %227, %188 : vector<8x32xf32>
    %235 = arith.mulf %222, %228 : vector<8x32xf32>
    %236 = arith.addf %234, %235 : vector<8x32xf32>
    %237 = math.tanh %236 : vector<8x32xf32>
    %238 = arith.mulf %233, %237 : vector<8x32xf32>
    %239 = arith.index_cast %c3_i32 : i32 to index
    %c0_120 = arith.constant 0 : index
    %c0_121 = arith.constant 0 : index
    %240 = vector.load %arg5[%239, %c0_120, %c0_121] : memref<8x8x32xf32, #tpu.memory_space<vmem>>, vector<1x8x32xf32>
    %241 = vector.shape_cast %240 : vector<1x8x32xf32> to vector<8x32xf32>
    %242 = vector.shape_cast %238 : vector<8x32xf32> to vector<1x8x32xf32>
    tpu.vector_store %arg5[%239, %c0_120, %c0_121], %242 {strides = array<i32>} : memref<8x8x32xf32, #tpu.memory_space<vmem>>, vector<1x8x32xf32>,
    %c4_i32 = arith.constant 4 : i32
    %243 = arith.truncf %238 : vector<8x32xf32> to vector<8x32xbf16>
    %c8_i32_122 = arith.constant 8 : i32
    %244 = arith.muli %c4_i32, %c8_i32_122 : i32
    %245 = tpu.assume_multiple %244, 8 : i32
    %c0_123 = arith.constant 0 : index
    %246 = arith.index_cast %245 : i32 to index
    %c0_124 = arith.constant 0 : index
    %247 = vector.load %arg7[%c0_123, %246, %c0_124] : memref<4x64x32xf32, #tpu.memory_space<vmem>>, vector<1x8x32xf32>
    %248 = vector.shape_cast %247 : vector<1x8x32xf32> to vector<8x32xf32>
    %cst_125 = arith.constant dense<0.000000e+00> : vector<8x32xf32>
    %249 = tpu.matmul %243, %42, %cst_125 {dimension_numbers = #tpu.dot_dimension_numbers<[1], [0], [0], [1], [0, 0, 1, 1], [], []>} : vector<8x32xbf16>, vector<32x32xbf16>, vector<8x32xf32> -> vector<8x32xf32>
    %250 = arith.addf %248, %249 : vector<8x32xf32>
    %c1_126 = arith.constant 1 : index
    %251 = arith.index_cast %245 : i32 to index
    %c0_127 = arith.constant 0 : index
    %252 = vector.load %arg7[%c1_126, %251, %c0_127] : memref<4x64x32xf32, #tpu.memory_space<vmem>>, vector<1x8x32xf32>
    %253 = vector.shape_cast %252 : vector<1x8x32xf32> to vector<8x32xf32>
    %cst_128 = arith.constant dense<0.000000e+00> : vector<8x32xf32>
    %254 = tpu.matmul %243, %44, %cst_128 {dimension_numbers = #tpu.dot_dimension_numbers<[1], [0], [0], [1], [0, 0, 1, 1], [], []>} : vector<8x32xbf16>, vector<32x32xbf16>, vector<8x32xf32> -> vector<8x32xf32>
    %255 = arith.addf %253, %254 : vector<8x32xf32>
    %c2_129 = arith.constant 2 : index
    %256 = arith.index_cast %245 : i32 to index
    %c0_130 = arith.constant 0 : index
    %257 = vector.load %arg7[%c2_129, %256, %c0_130] : memref<4x64x32xf32, #tpu.memory_space<vmem>>, vector<1x8x32xf32>
    %258 = vector.shape_cast %257 : vector<1x8x32xf32> to vector<8x32xf32>
    %cst_131 = arith.constant dense<0.000000e+00> : vector<8x32xf32>
    %259 = tpu.matmul %243, %46, %cst_131 {dimension_numbers = #tpu.dot_dimension_numbers<[1], [0], [0], [1], [0, 0, 1, 1], [], []>} : vector<8x32xbf16>, vector<32x32xbf16>, vector<8x32xf32> -> vector<8x32xf32>
    %260 = arith.addf %258, %259 : vector<8x32xf32>
    %c3_132 = arith.constant 3 : index
    %261 = arith.index_cast %245 : i32 to index
    %c0_133 = arith.constant 0 : index
    %262 = vector.load %arg7[%c3_132, %261, %c0_133] : memref<4x64x32xf32, #tpu.memory_space<vmem>>, vector<1x8x32xf32>
    %263 = vector.shape_cast %262 : vector<1x8x32xf32> to vector<8x32xf32>
    %cst_134 = arith.constant dense<0.000000e+00> : vector<8x32xf32>
    %264 = tpu.matmul %243, %48, %cst_134 {dimension_numbers = #tpu.dot_dimension_numbers<[1], [0], [0], [1], [0, 0, 1, 1], [], []>} : vector<8x32xbf16>, vector<32x32xbf16>, vector<8x32xf32> -> vector<8x32xf32>
    %265 = arith.addf %263, %264 : vector<8x32xf32>
    %266 = arith.negf %250 : vector<8x32xf32>
    %267 = math.exp %266 : vector<8x32xf32>
    %cst_135 = arith.constant 1.000000e+00 : f32
    %268 = vector.broadcast %cst_135 : f32 to vector<8x32xf32>
    %269 = arith.addf %268, %267 : vector<8x32xf32>
    %270 = arith.divf %268, %269 : vector<8x32xf32>
    %271 = arith.negf %255 : vector<8x32xf32>
    %272 = math.exp %271 : vector<8x32xf32>
    %cst_136 = arith.constant 1.000000e+00 : f32
    %273 = vector.broadcast %cst_136 : f32 to vector<8x32xf32>
    %274 = arith.addf %273, %272 : vector<8x32xf32>
    %275 = arith.divf %273, %274 : vector<8x32xf32>
    %276 = math.tanh %260 : vector<8x32xf32>
    %277 = arith.negf %265 : vector<8x32xf32>
    %278 = math.exp %277 : vector<8x32xf32>
    %cst_137 = arith.constant 1.000000e+00 : f32
    %279 = vector.broadcast %cst_137 : f32 to vector<8x32xf32>
    %280 = arith.addf %279, %278 : vector<8x32xf32>
    %281 = arith.divf %279, %280 : vector<8x32xf32>
    %282 = arith.mulf %275, %236 : vector<8x32xf32>
    %283 = arith.mulf %270, %276 : vector<8x32xf32>
    %284 = arith.addf %282, %283 : vector<8x32xf32>
    %285 = math.tanh %284 : vector<8x32xf32>
    %286 = arith.mulf %281, %285 : vector<8x32xf32>
    %287 = arith.index_cast %c4_i32 : i32 to index
    %c0_138 = arith.constant 0 : index
    %c0_139 = arith.constant 0 : index
    %288 = vector.load %arg5[%287, %c0_138, %c0_139] : memref<8x8x32xf32, #tpu.memory_space<vmem>>, vector<1x8x32xf32>
    %289 = vector.shape_cast %288 : vector<1x8x32xf32> to vector<8x32xf32>
    %290 = vector.shape_cast %286 : vector<8x32xf32> to vector<1x8x32xf32>
    tpu.vector_store %arg5[%287, %c0_138, %c0_139], %290 {strides = array<i32>} : memref<8x8x32xf32, #tpu.memory_space<vmem>>, vector<1x8x32xf32>,
    %c5_i32 = arith.constant 5 : i32
    %291 = arith.truncf %286 : vector<8x32xf32> to vector<8x32xbf16>
    %c8_i32_140 = arith.constant 8 : i32
    %292 = arith.muli %c5_i32, %c8_i32_140 : i32
    %293 = tpu.assume_multiple %292, 8 : i32
    %c0_141 = arith.constant 0 : index
    %294 = arith.index_cast %293 : i32 to index
    %c0_142 = arith.constant 0 : index
    %295 = vector.load %arg7[%c0_141, %294, %c0_142] : memref<4x64x32xf32, #tpu.memory_space<vmem>>, vector<1x8x32xf32>
    %296 = vector.shape_cast %295 : vector<1x8x32xf32> to vector<8x32xf32>
    %cst_143 = arith.constant dense<0.000000e+00> : vector<8x32xf32>
    %297 = tpu.matmul %291, %42, %cst_143 {dimension_numbers = #tpu.dot_dimension_numbers<[1], [0], [0], [1], [0, 0, 1, 1], [], []>} : vector<8x32xbf16>, vector<32x32xbf16>, vector<8x32xf32> -> vector<8x32xf32>
    %298 = arith.addf %296, %297 : vector<8x32xf32>
    %c1_144 = arith.constant 1 : index
    %299 = arith.index_cast %293 : i32 to index
    %c0_145 = arith.constant 0 : index
    %300 = vector.load %arg7[%c1_144, %299, %c0_145] : memref<4x64x32xf32, #tpu.memory_space<vmem>>, vector<1x8x32xf32>
    %301 = vector.shape_cast %300 : vector<1x8x32xf32> to vector<8x32xf32>
    %cst_146 = arith.constant dense<0.000000e+00> : vector<8x32xf32>
    %302 = tpu.matmul %291, %44, %cst_146 {dimension_numbers = #tpu.dot_dimension_numbers<[1], [0], [0], [1], [0, 0, 1, 1], [], []>} : vector<8x32xbf16>, vector<32x32xbf16>, vector<8x32xf32> -> vector<8x32xf32>
    %303 = arith.addf %301, %302 : vector<8x32xf32>
    %c2_147 = arith.constant 2 : index
    %304 = arith.index_cast %293 : i32 to index
    %c0_148 = arith.constant 0 : index
    %305 = vector.load %arg7[%c2_147, %304, %c0_148] : memref<4x64x32xf32, #tpu.memory_space<vmem>>, vector<1x8x32xf32>
    %306 = vector.shape_cast %305 : vector<1x8x32xf32> to vector<8x32xf32>
    %cst_149 = arith.constant dense<0.000000e+00> : vector<8x32xf32>
    %307 = tpu.matmul %291, %46, %cst_149 {dimension_numbers = #tpu.dot_dimension_numbers<[1], [0], [0], [1], [0, 0, 1, 1], [], []>} : vector<8x32xbf16>, vector<32x32xbf16>, vector<8x32xf32> -> vector<8x32xf32>
    %308 = arith.addf %306, %307 : vector<8x32xf32>
    %c3_150 = arith.constant 3 : index
    %309 = arith.index_cast %293 : i32 to index
    %c0_151 = arith.constant 0 : index
    %310 = vector.load %arg7[%c3_150, %309, %c0_151] : memref<4x64x32xf32, #tpu.memory_space<vmem>>, vector<1x8x32xf32>
    %311 = vector.shape_cast %310 : vector<1x8x32xf32> to vector<8x32xf32>
    %cst_152 = arith.constant dense<0.000000e+00> : vector<8x32xf32>
    %312 = tpu.matmul %291, %48, %cst_152 {dimension_numbers = #tpu.dot_dimension_numbers<[1], [0], [0], [1], [0, 0, 1, 1], [], []>} : vector<8x32xbf16>, vector<32x32xbf16>, vector<8x32xf32> -> vector<8x32xf32>
    %313 = arith.addf %311, %312 : vector<8x32xf32>
    %314 = arith.negf %298 : vector<8x32xf32>
    %315 = math.exp %314 : vector<8x32xf32>
    %cst_153 = arith.constant 1.000000e+00 : f32
    %316 = vector.broadcast %cst_153 : f32 to vector<8x32xf32>
    %317 = arith.addf %316, %315 : vector<8x32xf32>
    %318 = arith.divf %316, %317 : vector<8x32xf32>
    %319 = arith.negf %303 : vector<8x32xf32>
    %320 = math.exp %319 : vector<8x32xf32>
    %cst_154 = arith.constant 1.000000e+00 : f32
    %321 = vector.broadcast %cst_154 : f32 to vector<8x32xf32>
    %322 = arith.addf %321, %320 : vector<8x32xf32>
    %323 = arith.divf %321, %322 : vector<8x32xf32>
    %324 = math.tanh %308 : vector<8x32xf32>
    %325 = arith.negf %313 : vector<8x32xf32>
    %326 = math.exp %325 : vector<8x32xf32>
    %cst_155 = arith.constant 1.000000e+00 : f32
    %327 = vector.broadcast %cst_155 : f32 to vector<8x32xf32>
    %328 = arith.addf %327, %326 : vector<8x32xf32>
    %329 = arith.divf %327, %328 : vector<8x32xf32>
    %330 = arith.mulf %323, %284 : vector<8x32xf32>
    %331 = arith.mulf %318, %324 : vector<8x32xf32>
    %332 = arith.addf %330, %331 : vector<8x32xf32>
    %333 = math.tanh %332 : vector<8x32xf32>
    %334 = arith.mulf %329, %333 : vector<8x32xf32>
    %335 = arith.index_cast %c5_i32 : i32 to index
    %c0_156 = arith.constant 0 : index
    %c0_157 = arith.constant 0 : index
    %336 = vector.load %arg5[%335, %c0_156, %c0_157] : memref<8x8x32xf32, #tpu.memory_space<vmem>>, vector<1x8x32xf32>
    %337 = vector.shape_cast %336 : vector<1x8x32xf32> to vector<8x32xf32>
    %338 = vector.shape_cast %334 : vector<8x32xf32> to vector<1x8x32xf32>
    tpu.vector_store %arg5[%335, %c0_156, %c0_157], %338 {strides = array<i32>} : memref<8x8x32xf32, #tpu.memory_space<vmem>>, vector<1x8x32xf32>,
    %c6_i32 = arith.constant 6 : i32
    %339 = arith.truncf %334 : vector<8x32xf32> to vector<8x32xbf16>
    %c8_i32_158 = arith.constant 8 : i32
    %340 = arith.muli %c6_i32, %c8_i32_158 : i32
    %341 = tpu.assume_multiple %340, 8 : i32
    %c0_159 = arith.constant 0 : index
    %342 = arith.index_cast %341 : i32 to index
    %c0_160 = arith.constant 0 : index
    %343 = vector.load %arg7[%c0_159, %342, %c0_160] : memref<4x64x32xf32, #tpu.memory_space<vmem>>, vector<1x8x32xf32>
    %344 = vector.shape_cast %343 : vector<1x8x32xf32> to vector<8x32xf32>
    %cst_161 = arith.constant dense<0.000000e+00> : vector<8x32xf32>
    %345 = tpu.matmul %339, %42, %cst_161 {dimension_numbers = #tpu.dot_dimension_numbers<[1], [0], [0], [1], [0, 0, 1, 1], [], []>} : vector<8x32xbf16>, vector<32x32xbf16>, vector<8x32xf32> -> vector<8x32xf32>
    %346 = arith.addf %344, %345 : vector<8x32xf32>
    %c1_162 = arith.constant 1 : index
    %347 = arith.index_cast %341 : i32 to index
    %c0_163 = arith.constant 0 : index
    %348 = vector.load %arg7[%c1_162, %347, %c0_163] : memref<4x64x32xf32, #tpu.memory_space<vmem>>, vector<1x8x32xf32>
    %349 = vector.shape_cast %348 : vector<1x8x32xf32> to vector<8x32xf32>
    %cst_164 = arith.constant dense<0.000000e+00> : vector<8x32xf32>
    %350 = tpu.matmul %339, %44, %cst_164 {dimension_numbers = #tpu.dot_dimension_numbers<[1], [0], [0], [1], [0, 0, 1, 1], [], []>} : vector<8x32xbf16>, vector<32x32xbf16>, vector<8x32xf32> -> vector<8x32xf32>
    %351 = arith.addf %349, %350 : vector<8x32xf32>
    %c2_165 = arith.constant 2 : index
    %352 = arith.index_cast %341 : i32 to index
    %c0_166 = arith.constant 0 : index
    %353 = vector.load %arg7[%c2_165, %352, %c0_166] : memref<4x64x32xf32, #tpu.memory_space<vmem>>, vector<1x8x32xf32>
    %354 = vector.shape_cast %353 : vector<1x8x32xf32> to vector<8x32xf32>
    %cst_167 = arith.constant dense<0.000000e+00> : vector<8x32xf32>
    %355 = tpu.matmul %339, %46, %cst_167 {dimension_numbers = #tpu.dot_dimension_numbers<[1], [0], [0], [1], [0, 0, 1, 1], [], []>} : vector<8x32xbf16>, vector<32x32xbf16>, vector<8x32xf32> -> vector<8x32xf32>
    %356 = arith.addf %354, %355 : vector<8x32xf32>
    %c3_168 = arith.constant 3 : index
    %357 = arith.index_cast %341 : i32 to index
    %c0_169 = arith.constant 0 : index
    %358 = vector.load %arg7[%c3_168, %357, %c0_169] : memref<4x64x32xf32, #tpu.memory_space<vmem>>, vector<1x8x32xf32>
    %359 = vector.shape_cast %358 : vector<1x8x32xf32> to vector<8x32xf32>
    %cst_170 = arith.constant dense<0.000000e+00> : vector<8x32xf32>
    %360 = tpu.matmul %339, %48, %cst_170 {dimension_numbers = #tpu.dot_dimension_numbers<[1], [0], [0], [1], [0, 0, 1, 1], [], []>} : vector<8x32xbf16>, vector<32x32xbf16>, vector<8x32xf32> -> vector<8x32xf32>
    %361 = arith.addf %359, %360 : vector<8x32xf32>
    %362 = arith.negf %346 : vector<8x32xf32>
    %363 = math.exp %362 : vector<8x32xf32>
    %cst_171 = arith.constant 1.000000e+00 : f32
    %364 = vector.broadcast %cst_171 : f32 to vector<8x32xf32>
    %365 = arith.addf %364, %363 : vector<8x32xf32>
    %366 = arith.divf %364, %365 : vector<8x32xf32>
    %367 = arith.negf %351 : vector<8x32xf32>
    %368 = math.exp %367 : vector<8x32xf32>
    %cst_172 = arith.constant 1.000000e+00 : f32
    %369 = vector.broadcast %cst_172 : f32 to vector<8x32xf32>
    %370 = arith.addf %369, %368 : vector<8x32xf32>
    %371 = arith.divf %369, %370 : vector<8x32xf32>
    %372 = math.tanh %356 : vector<8x32xf32>
    %373 = arith.negf %361 : vector<8x32xf32>
    %374 = math.exp %373 : vector<8x32xf32>
    %cst_173 = arith.constant 1.000000e+00 : f32
    %375 = vector.broadcast %cst_173 : f32 to vector<8x32xf32>
    %376 = arith.addf %375, %374 : vector<8x32xf32>
    %377 = arith.divf %375, %376 : vector<8x32xf32>
    %378 = arith.mulf %371, %332 : vector<8x32xf32>
    %379 = arith.mulf %366, %372 : vector<8x32xf32>
    %380 = arith.addf %378, %379 : vector<8x32xf32>
    %381 = math.tanh %380 : vector<8x32xf32>
    %382 = arith.mulf %377, %381 : vector<8x32xf32>
    %383 = arith.index_cast %c6_i32 : i32 to index
    %c0_174 = arith.constant 0 : index
    %c0_175 = arith.constant 0 : index
    %384 = vector.load %arg5[%383, %c0_174, %c0_175] : memref<8x8x32xf32, #tpu.memory_space<vmem>>, vector<1x8x32xf32>
    %385 = vector.shape_cast %384 : vector<1x8x32xf32> to vector<8x32xf32>
    %386 = vector.shape_cast %382 : vector<8x32xf32> to vector<1x8x32xf32>
    tpu.vector_store %arg5[%383, %c0_174, %c0_175], %386 {strides = array<i32>} : memref<8x8x32xf32, #tpu.memory_space<vmem>>, vector<1x8x32xf32>,
    %c7_i32 = arith.constant 7 : i32
    %387 = arith.truncf %382 : vector<8x32xf32> to vector<8x32xbf16>
    %c8_i32_176 = arith.constant 8 : i32
    %388 = arith.muli %c7_i32, %c8_i32_176 : i32
    %389 = tpu.assume_multiple %388, 8 : i32
    %c0_177 = arith.constant 0 : index
    %390 = arith.index_cast %389 : i32 to index
    %c0_178 = arith.constant 0 : index
    %391 = vector.load %arg7[%c0_177, %390, %c0_178] : memref<4x64x32xf32, #tpu.memory_space<vmem>>, vector<1x8x32xf32>
    %392 = vector.shape_cast %391 : vector<1x8x32xf32> to vector<8x32xf32>
    %cst_179 = arith.constant dense<0.000000e+00> : vector<8x32xf32>
    %393 = tpu.matmul %387, %42, %cst_179 {dimension_numbers = #tpu.dot_dimension_numbers<[1], [0], [0], [1], [0, 0, 1, 1], [], []>} : vector<8x32xbf16>, vector<32x32xbf16>, vector<8x32xf32> -> vector<8x32xf32>
    %394 = arith.addf %392, %393 : vector<8x32xf32>
    %c1_180 = arith.constant 1 : index
    %395 = arith.index_cast %389 : i32 to index
    %c0_181 = arith.constant 0 : index
    %396 = vector.load %arg7[%c1_180, %395, %c0_181] : memref<4x64x32xf32, #tpu.memory_space<vmem>>, vector<1x8x32xf32>
    %397 = vector.shape_cast %396 : vector<1x8x32xf32> to vector<8x32xf32>
    %cst_182 = arith.constant dense<0.000000e+00> : vector<8x32xf32>
    %398 = tpu.matmul %387, %44, %cst_182 {dimension_numbers = #tpu.dot_dimension_numbers<[1], [0], [0], [1], [0, 0, 1, 1], [], []>} : vector<8x32xbf16>, vector<32x32xbf16>, vector<8x32xf32> -> vector<8x32xf32>
    %399 = arith.addf %397, %398 : vector<8x32xf32>
    %c2_183 = arith.constant 2 : index
    %400 = arith.index_cast %389 : i32 to index
    %c0_184 = arith.constant 0 : index
    %401 = vector.load %arg7[%c2_183, %400, %c0_184] : memref<4x64x32xf32, #tpu.memory_space<vmem>>, vector<1x8x32xf32>
    %402 = vector.shape_cast %401 : vector<1x8x32xf32> to vector<8x32xf32>
    %cst_185 = arith.constant dense<0.000000e+00> : vector<8x32xf32>
    %403 = tpu.matmul %387, %46, %cst_185 {dimension_numbers = #tpu.dot_dimension_numbers<[1], [0], [0], [1], [0, 0, 1, 1], [], []>} : vector<8x32xbf16>, vector<32x32xbf16>, vector<8x32xf32> -> vector<8x32xf32>
    %404 = arith.addf %402, %403 : vector<8x32xf32>
    %c3_186 = arith.constant 3 : index
    %405 = arith.index_cast %389 : i32 to index
    %c0_187 = arith.constant 0 : index
    %406 = vector.load %arg7[%c3_186, %405, %c0_187] : memref<4x64x32xf32, #tpu.memory_space<vmem>>, vector<1x8x32xf32>
    %407 = vector.shape_cast %406 : vector<1x8x32xf32> to vector<8x32xf32>
    %cst_188 = arith.constant dense<0.000000e+00> : vector<8x32xf32>
    %408 = tpu.matmul %387, %48, %cst_188 {dimension_numbers = #tpu.dot_dimension_numbers<[1], [0], [0], [1], [0, 0, 1, 1], [], []>} : vector<8x32xbf16>, vector<32x32xbf16>, vector<8x32xf32> -> vector<8x32xf32>
    %409 = arith.addf %407, %408 : vector<8x32xf32>
    %410 = arith.negf %394 : vector<8x32xf32>
    %411 = math.exp %410 : vector<8x32xf32>
    %cst_189 = arith.constant 1.000000e+00 : f32
    %412 = vector.broadcast %cst_189 : f32 to vector<8x32xf32>
    %413 = arith.addf %412, %411 : vector<8x32xf32>
    %414 = arith.divf %412, %413 : vector<8x32xf32>
    %415 = arith.negf %399 : vector<8x32xf32>
    %416 = math.exp %415 : vector<8x32xf32>
    %cst_190 = arith.constant 1.000000e+00 : f32
    %417 = vector.broadcast %cst_190 : f32 to vector<8x32xf32>
    %418 = arith.addf %417, %416 : vector<8x32xf32>
    %419 = arith.divf %417, %418 : vector<8x32xf32>
    %420 = math.tanh %404 : vector<8x32xf32>
    %421 = arith.negf %409 : vector<8x32xf32>
    %422 = math.exp %421 : vector<8x32xf32>
    %cst_191 = arith.constant 1.000000e+00 : f32
    %423 = vector.broadcast %cst_191 : f32 to vector<8x32xf32>
    %424 = arith.addf %423, %422 : vector<8x32xf32>
    %425 = arith.divf %423, %424 : vector<8x32xf32>
    %426 = arith.mulf %419, %380 : vector<8x32xf32>
    %427 = arith.mulf %414, %420 : vector<8x32xf32>
    %428 = arith.addf %426, %427 : vector<8x32xf32>
    %429 = math.tanh %428 : vector<8x32xf32>
    %430 = arith.mulf %425, %429 : vector<8x32xf32>
    %431 = arith.index_cast %c7_i32 : i32 to index
    %c0_192 = arith.constant 0 : index
    %c0_193 = arith.constant 0 : index
    %432 = vector.load %arg5[%431, %c0_192, %c0_193] : memref<8x8x32xf32, #tpu.memory_space<vmem>>, vector<1x8x32xf32>
    %433 = vector.shape_cast %432 : vector<1x8x32xf32> to vector<8x32xf32>
    %434 = vector.shape_cast %430 : vector<8x32xf32> to vector<1x8x32xf32>
    tpu.vector_store %arg5[%431, %c0_192, %c0_193], %434 {strides = array<i32>} : memref<8x8x32xf32, #tpu.memory_space<vmem>>, vector<1x8x32xf32>,
    %c8_i32_194 = arith.constant 8 : i32
    %c0_195 = arith.constant 0 : index
    %c0_196 = arith.constant 0 : index
    %c0_197 = arith.constant 0 : index
    %435 = vector.load %arg6[%c0_195, %c0_196, %c0_197] : memref<1x8x32xf32, #tpu.memory_space<vmem>>, vector<1x8x32xf32>
    %436 = vector.shape_cast %435 : vector<1x8x32xf32> to vector<8x32xf32>
    %437 = vector.shape_cast %428 : vector<8x32xf32> to vector<1x8x32xf32>
    tpu.vector_store %arg6[%c0_195, %c0_196, %c0_197], %437 {strides = array<i32>} : memref<1x8x32xf32, #tpu.memory_space<vmem>>, vector<1x8x32xf32>,
    return
  }
  func.func @transform_0(%arg0: i32) -> (i32, i32) {
    %c0_i32 = arith.constant 0 : i32
    %c0_i32_0 = arith.constant 0 : i32
    %c0_i32_1 = arith.constant 0 : i32
    return %c0_i32, %c0_i32_0 : i32, i32
  }
  func.func @transform_1(%arg0: i32) -> (i32, i32, i32) {
    %c0_i32 = arith.constant 0 : i32
    %c0_i32_0 = arith.constant 0 : i32
    %c0_i32_1 = arith.constant 0 : i32
    %c0_i32_2 = arith.constant 0 : i32
    return %c0_i32, %c0_i32_0, %c0_i32_1 : i32, i32, i32
  }
  func.func @transform_2(%arg0: i32) -> (i32, i32, i32) {
    %c0_i32 = arith.constant 0 : i32
    %c0_i32_0 = arith.constant 0 : i32
    %c0_i32_1 = arith.constant 0 : i32
    %c0_i32_2 = arith.constant 0 : i32
    return %c0_i32, %c0_i32_0, %c0_i32_1 : i32, i32, i32
  }
  func.func @transform_3(%arg0: i32) -> (i32, i32, i32) {
    %c0_i32 = arith.constant 0 : i32
    %c0_i32_0 = arith.constant 0 : i32
    %c0_i32_1 = arith.constant 0 : i32
    %c0_i32_2 = arith.constant 0 : i32
    return %c0_i32, %c0_i32_0, %c0_i32_1 : i32, i32, i32
  }
  func.func @transform_4(%arg0: i32) -> (i32, i32, i32) {
    %c0_i32 = arith.constant 0 : i32
    %c0_i32_0 = arith.constant 0 : i32
    %c0_i32_1 = arith.constant 0 : i32
    %c0_i32_2 = arith.constant 0 : i32
    return %c0_i32, %c0_i32_0, %c0_i32_1 : i32, i32, i32
  }
  func.func @transform_5(%arg0: i32) -> (i32, i32, i32) {
    %c0_i32 = arith.constant 0 : i32
    %c0_i32_0 = arith.constant 0 : i32
    %c0_i32_1 = arith.constant 0 : i32
    %c0_i32_2 = arith.constant 0 : i32
    return %c0_i32, %c0_i32_0, %c0_i32_1 : i32, i32, i32
  }
}

</mosaic_0001>

<llo_original>
// kernel: lstm_encoder_forward.1
$region0: #{lstm_encoder_forward.1}
  #allocation0 [shape = 'u32[]', space=smem, size = 0x4, offset = 0x4, fixed_abs, tag = 'smem constant byte address 0x4 - core index']
  #allocation1 [shape = 'u32[72,128]{1,0:T(1,128)}', space=vmem, size = 0x9000, scoped, tag = 'internal scratch']
  #allocation2 [shape = 'f32[4,64,32]{2,1,0:T(8,128)}', space=vmem, size = 0x20000, scoped, tag = 'scratch operand']
  %s0 = inlined_call_operand.vmem [shape: bf16[64,16], index: 0, kind: input, shape index: {}]
  %s1 = inlined_call_operand.vmem [shape: bf16[4,16,32], index: 1, kind: input, shape index: {}]
  %s2 = inlined_call_operand.vmem [shape: bf16[4,32,32], index: 2, kind: input, shape index: {}]
  %s3 = inlined_call_operand.vmem [shape: f32[4,1,32], index: 3, kind: input, shape index: {}]
  %s4 = inlined_call_operand.vmem [shape: f32[8,8,32], index: 4, kind: output, shape index: {0}]
  %s5 = inlined_call_operand.hbm [shape: f32[1,8,32], index: 5, kind: output, shape index: {1}]
  %6 = xla_tuple %s4, %s5
  %s7 = sld [smem:[#allocation0]]
  $region34: #{lstm_encoder_forward.1} parent=0
    _
  %s9 = ssub.s32 1, %s7
  %s10 = scalar_select 0, %s9, %s7
  $region1: #{lstm_encoder_forward.1} parent=0
    #allocation3 [shape = 'u8[4096]{0}', space=vmem, size = 0x1000, scoped, tag = 'output window, operand 1, single buffered']
    #allocation4 [shape = 's32[1]{0}', space=sflag, size = 0x4, scoped, tag = 'scoped memory for lstm_encoder_forward.1']
    %11 = vsyncpa [#allocation4], 0
    // Predicated region
    $region2: #{lstm_encoder_forward.1} parent=1 // pred_check
      _
    $region3: #{lstm_encoder_forward.1} parent=1 // pred_check_branch
      %13 = sbr.rel (0) target = $region5
    $region4: #{lstm_encoder_forward.1} parent=1 // pred_region
      _
    $region5: #{lstm_encoder_forward.1} parent=1 // pred_fallthru
      _
    // Predicated region
    $region6: #{lstm_encoder_forward.1} parent=1 // pred_check
      _
    $region7: #{lstm_encoder_forward.1} parent=1 // pred_check_branch
      %15 = sbr.rel (0) target = $region9
    $region8: #{lstm_encoder_forward.1} parent=1 // pred_region
      _
    $region9: #{lstm_encoder_forward.1} parent=1 // pred_fallthru
      _
    // Predicated region
    $region10: #{lstm_encoder_forward.1} parent=1 // pred_check
      _
    $region11: #{lstm_encoder_forward.1} parent=1 // pred_check_branch
      %17 = sbr.rel (0) target = $region13
    $region12: #{lstm_encoder_forward.1} parent=1 // pred_region
      _
    $region13: #{lstm_encoder_forward.1} parent=1 // pred_fallthru
      _
    // Predicated region
    $region14: #{lstm_encoder_forward.1} parent=1 // pred_check
      _
    $region15: #{lstm_encoder_forward.1} parent=1 // pred_check_branch
      %19 = sbr.rel (0) target = $region17
    $region16: #{lstm_encoder_forward.1} parent=1 // pred_region
      _
    $region17: #{lstm_encoder_forward.1} parent=1 // pred_fallthru
      _
    %v21 = vld [vmem:[%s0] sm:$0xf]
    %v22 = vld [vmem:[%s0 + $0x4] sm:$0xf]
    %v23 = vld [vmem:[%s0 + $0x8] sm:$0xf]
    %v24 = vld [vmem:[%s0 + $0xc] sm:$0xf]
    %v25 = vld [vmem:[%s0 + $0x10] sm:$0xf]
    %v26 = vld [vmem:[%s0 + $0x14] sm:$0xf]
    %v27 = vld [vmem:[%s0 + $0x18] sm:$0xf]
    %v28 = vld [vmem:[%s0 + $0x1c] sm:$0xf]
    %v29 = vld [vmem:[%s1] sm:$0xf]
    %v30 = vld [vmem:[%s1 + $0x4] sm:$0xf]
    %v31 = vld [vmem:[%s3] sm:$0x1]
    %v33 = vperm.slane %v31, 0
    %v43 = vunpack.c.l.b16 %v21
    %v44 = vunpack.c.l.b16 %v22
    %v45 = vunpack.c.l.b16 %v23
    %v46 = vunpack.c.l.b16 %v24
    %v47 = vunpack.c.l.b16 %v25
    %v48 = vunpack.c.l.b16 %v26
    %v49 = vunpack.c.l.b16 %v27
    %v50 = vunpack.c.l.b16 %v28
    %v51 = vpack.c.b16 %v44, %v43
    %v52 = vpack.c.b16 %v46, %v45
    %v53 = vpack.c.b16 %v48, %v47
    %v54 = vpack.c.b16 %v50, %v49
    %v57 = vunpack.c.l.b16 %v29
    %v58 = vunpack.c.l.b16 %v30
    %v59 = vpack.c.b16 %v58, %v57
    %vm61 = vcmask 130048
    %v63 = vsel %vm61, %v51, 0
    %v66 = vsel %vm61, %v52, 0
    %v69 = vsel %vm61, %v53, 0
    %v72 = vsel %vm61, %v54, 0
    %74 = vmatpush.bf16.msra.mxu0 0
    %75 = vmatpush.bf16.msra.mxu0 0
    %76 = vmatpush.bf16.msra.mxu0 0
    %77 = vmatpush.bf16.msra.mxu0 0
    %78 = vmatpush.bf16.msra.mxu0 0
    %79 = vmatpush.bf16.msra.mxu0 0
    %80 = vmatpush.bf16.msra.mxu0 0
    %81 = vmatpush.bf16.msra.mxu0 %v59
    %82 = vmatmul.bf16.gmra.mxu0 %v63
    %v83 = vpop.f32.mrf.mxu0
    %v84 = vadd.f32 %v33, %v83
    %v85 = vpop.f32.mrf.mxu0
    %v86 = vadd.f32 %v33, %v85
    %87 = vmatmul.bf16.gmra.mxu0 %v66
    %v88 = vpop.f32.mrf.mxu0
    %v89 = vadd.f32 %v33, %v88
    %v90 = vpop.f32.mrf.mxu0
    %v91 = vadd.f32 %v33, %v90
    %92 = vmatmul.bf16.gmra.mxu0 %v69
    %v93 = vpop.f32.mrf.mxu0
    %v94 = vadd.f32 %v33, %v93
    %v95 = vpop.f32.mrf.mxu0
    %v96 = vadd.f32 %v33, %v95
    %97 = vmatmul.bf16.gmra.mxu0 %v72
    %v98 = vpop.f32.mrf.mxu0
    %v99 = vadd.f32 %v33, %v98
    %v100 = vpop.f32.mrf.mxu0
    %v101 = vadd.f32 %v33, %v100
    %102 = vdwg.mxu0
    %vm103 = vcmask 261120
    %104 = vst.msk [vmem:[#allocation2] sm:$0xff] %vm103, %v84
    %105 = vst.msk [vmem:[#allocation2 + $0x8] sm:$0xff] %vm103, %v86
    %106 = vst.msk [vmem:[#allocation2 + $0x10] sm:$0xff] %vm103, %v89
    %107 = vst.msk [vmem:[#allocation2 + $0x18] sm:$0xff] %vm103, %v91
    %108 = vst.msk [vmem:[#allocation2 + $0x20] sm:$0xff] %vm103, %v94
    %109 = vst.msk [vmem:[#allocation2 + $0x28] sm:$0xff] %vm103, %v96
    %110 = vst.msk [vmem:[#allocation2 + $0x30] sm:$0xff] %vm103, %v99
    %111 = vst.msk [vmem:[#allocation2 + $0x38] sm:$0xff] %vm103, %v101
    %s112 = scalar_lea.vmem %s1, 8
    %v113 = vld [vmem:[%s112] sm:$0xf]
    %v114 = vld [vmem:[%s112 + $0x4] sm:$0xf]
    %s115 = scalar_lea.vmem %s3, 1
    %v116 = vld [vmem:[%s115] sm:$0x1]
    %v118 = vperm.slane %v116, 0
    %v122 = vunpack.c.l.b16 %v113
    %v123 = vunpack.c.l.b16 %v114
    %v124 = vpack.c.b16 %v123, %v122
    %126 = vmatpush.bf16.msra.mxu0 0
    %127 = vmatpush.bf16.msra.mxu0 0
    %128 = vmatpush.bf16.msra.mxu0 0
    %129 = vmatpush.bf16.msra.mxu0 0
    %130 = vmatpush.bf16.msra.mxu0 0
    %131 = vmatpush.bf16.msra.mxu0 0
    %132 = vmatpush.bf16.msra.mxu0 0
    %133 = vmatpush.bf16.msra.mxu0 %v124
    %134 = vmatmul.bf16.gmra.mxu0 %v63
    %v135 = vpop.f32.mrf.mxu0
    %v136 = vadd.f32 %v118, %v135
    %v137 = vpop.f32.mrf.mxu0
    %v138 = vadd.f32 %v118, %v137
    %139 = vmatmul.bf16.gmra.mxu0 %v66
    %v140 = vpop.f32.mrf.mxu0
    %v141 = vadd.f32 %v118, %v140
    %v142 = vpop.f32.mrf.mxu0
    %v143 = vadd.f32 %v118, %v142
    %144 = vmatmul.bf16.gmra.mxu0 %v69
    %v145 = vpop.f32.mrf.mxu0
    %v146 = vadd.f32 %v118, %v145
    %v147 = vpop.f32.mrf.mxu0
    %v148 = vadd.f32 %v118, %v147
    %149 = vmatmul.bf16.gmra.mxu0 %v72
    %v150 = vpop.f32.mrf.mxu0
    %v151 = vadd.f32 %v118, %v150
    %v152 = vpop.f32.mrf.mxu0
    %v153 = vadd.f32 %v118, %v152
    %154 = vdwg.mxu0
    %s155 = scalar_lea.vmem [#allocation2], 64
    %156 = vst.msk [vmem:[%s155] sm:$0xff] %vm103, %v136
    %157 = vst.msk [vmem:[%s155 + $0x8] sm:$0xff] %vm103, %v138
    %158 = vst.msk [vmem:[%s155 + $0x10] sm:$0xff] %vm103, %v141
    %159 = vst.msk [vmem:[%s155 + $0x18] sm:$0xff] %vm103, %v143
    %160 = vst.msk [vmem:[%s155 + $0x20] sm:$0xff] %vm103, %v146
    %161 = vst.msk [vmem:[%s155 + $0x28] sm:$0xff] %vm103, %v148
    %162 = vst.msk [vmem:[%s155 + $0x30] sm:$0xff] %vm103, %v151
    %163 = vst.msk [vmem:[%s155 + $0x38] sm:$0xff] %vm103, %v153
    %s164 = scalar_lea.vmem %s1, 16
    %v165 = vld [vmem:[%s164] sm:$0xf]
    %v166 = vld [vmem:[%s164 + $0x4] sm:$0xf]
    %s167 = scalar_lea.vmem %s3, 2
    %v168 = vld [vmem:[%s167] sm:$0x1]
    %v170 = vperm.slane %v168, 0
    %v174 = vunpack.c.l.b16 %v165
    %v175 = vunpack.c.l.b16 %v166
    %v176 = vpack.c.b16 %v175, %v174
    %178 = vmatpush.bf16.msra.mxu0 0
    %179 = vmatpush.bf16.msra.mxu0 0
    %180 = vmatpush.bf16.msra.mxu0 0
    %181 = vmatpush.bf16.msra.mxu0 0
    %182 = vmatpush.bf16.msra.mxu0 0
    %183 = vmatpush.bf16.msra.mxu0 0
    %184 = vmatpush.bf16.msra.mxu0 0
    %185 = vmatpush.bf16.msra.mxu0 %v176
    %186 = vmatmul.bf16.gmra.mxu0 %v63
    %v187 = vpop.f32.mrf.mxu0
    %v188 = vadd.f32 %v170, %v187
    %v189 = vpop.f32.mrf.mxu0
    %v190 = vadd.f32 %v170, %v189
    %191 = vmatmul.bf16.gmra.mxu0 %v66
    %v192 = vpop.f32.mrf.mxu0
    %v193 = vadd.f32 %v170, %v192
    %v194 = vpop.f32.mrf.mxu0
    %v195 = vadd.f32 %v170, %v194
    %196 = vmatmul.bf16.gmra.mxu0 %v69
    %v197 = vpop.f32.mrf.mxu0
    %v198 = vadd.f32 %v170, %v197
    %v199 = vpop.f32.mrf.mxu0
    %v200 = vadd.f32 %v170, %v199
    %201 = vmatmul.bf16.gmra.mxu0 %v72
    %v202 = vpop.f32.mrf.mxu0
    %v203 = vadd.f32 %v170, %v202
    %v204 = vpop.f32.mrf.mxu0
    %v205 = vadd.f32 %v170, %v204
    %206 = vdwg.mxu0
    %s207 = scalar_lea.vmem [#allocation2], 128
    %208 = vst.msk [vmem:[%s207] sm:$0xff] %vm103, %v188
    %209 = vst.msk [vmem:[%s207 + $0x8] sm:$0xff] %vm103, %v190
    %210 = vst.msk [vmem:[%s207 + $0x10] sm:$0xff] %vm103, %v193
    %211 = vst.msk [vmem:[%s207 + $0x18] sm:$0xff] %vm103, %v195
    %212 = vst.msk [vmem:[%s207 + $0x20] sm:$0xff] %vm103, %v198
    %213 = vst.msk [vmem:[%s207 + $0x28] sm:$0xff] %vm103, %v200
    %214 = vst.msk [vmem:[%s207 + $0x30] sm:$0xff] %vm103, %v203
    %215 = vst.msk [vmem:[%s207 + $0x38] sm:$0xff] %vm103, %v205
    %s216 = scalar_lea.vmem %s1, 24
    %v217 = vld [vmem:[%s216] sm:$0xf]
    %v218 = vld [vmem:[%s216 + $0x4] sm:$0xf]
    %s219 = scalar_lea.vmem %s3, 3
    %v220 = vld [vmem:[%s219] sm:$0x1]
    %v222 = vperm.slane %v220, 0
    %v226 = vunpack.c.l.b16 %v217
    %v227 = vunpack.c.l.b16 %v218
    %v228 = vpack.c.b16 %v227, %v226
    %230 = vmatpush.bf16.msra.mxu0 0
    %231 = vmatpush.bf16.msra.mxu0 0
    %232 = vmatpush.bf16.msra.mxu0 0
    %233 = vmatpush.bf16.msra.mxu0 0
    %234 = vmatpush.bf16.msra.mxu0 0
    %235 = vmatpush.bf16.msra.mxu0 0
    %236 = vmatpush.bf16.msra.mxu0 0
    %237 = vmatpush.bf16.msra.mxu0 %v228
    %238 = vmatmul.bf16.gmra.mxu0 %v63
    %v239 = vpop.f32.mrf.mxu0
    %v240 = vadd.f32 %v222, %v239
    %v241 = vpop.f32.mrf.mxu0
    %v242 = vadd.f32 %v222, %v241
    %243 = vmatmul.bf16.gmra.mxu0 %v66
    %v244 = vpop.f32.mrf.mxu0
    %v245 = vadd.f32 %v222, %v244
    %v246 = vpop.f32.mrf.mxu0
    %v247 = vadd.f32 %v222, %v246
    %248 = vmatmul.bf16.gmra.mxu0 %v69
    %v249 = vpop.f32.mrf.mxu0
    %v250 = vadd.f32 %v222, %v249
    %v251 = vpop.f32.mrf.mxu0
    %v252 = vadd.f32 %v222, %v251
    %253 = vmatmul.bf16.gmra.mxu0 %v72
    %v254 = vpop.f32.mrf.mxu0
    %v255 = vadd.f32 %v222, %v254
    %v256 = vpop.f32.mrf.mxu0
    %v257 = vadd.f32 %v222, %v256
    %258 = vdwg.mxu0
    %s259 = scalar_lea.vmem [#allocation2], 192
    %260 = vst.msk [vmem:[%s259] sm:$0xff] %vm103, %v240
    %261 = vst.msk [vmem:[%s259 + $0x8] sm:$0xff] %vm103, %v242
    %262 = vst.msk [vmem:[%s259 + $0x10] sm:$0xff] %vm103, %v245
    %263 = vst.msk [vmem:[%s259 + $0x18] sm:$0xff] %vm103, %v247
    %264 = vst.msk [vmem:[%s259 + $0x20] sm:$0xff] %vm103, %v250
    %265 = vst.msk [vmem:[%s259 + $0x28] sm:$0xff] %vm103, %v252
    %266 = vst.msk [vmem:[%s259 + $0x30] sm:$0xff] %vm103, %v255
    %267 = vst.msk [vmem:[%s259 + $0x38] sm:$0xff] %vm103, %v257
    %v268 = vld [vmem:[%s2] sm:$0xf]
    %v269 = vld [vmem:[%s2 + $0x4] sm:$0xf]
    %v270 = vld [vmem:[%s2 + $0x8] sm:$0xf]
    %v271 = vld [vmem:[%s2 + $0xc] sm:$0xf]
    %s272 = scalar_lea.vmem %s2, 16
    %v273 = vld [vmem:[%s272] sm:$0xf]
    %v274 = vld [vmem:[%s272 + $0x4] sm:$0xf]
    %v275 = vld [vmem:[%s272 + $0x8] sm:$0xf]
    %v276 = vld [vmem:[%s272 + $0xc] sm:$0xf]
    %s277 = scalar_lea.vmem %s2, 32
    %v278 = vld [vmem:[%s277] sm:$0xf]
    %v279 = vld [vmem:[%s277 + $0x4] sm:$0xf]
    %v280 = vld [vmem:[%s277 + $0x8] sm:$0xf]
    %v281 = vld [vmem:[%s277 + $0xc] sm:$0xf]
    %s282 = scalar_lea.vmem %s2, 48
    %v283 = vld [vmem:[%s282] sm:$0xf]
    %v284 = vld [vmem:[%s282 + $0x4] sm:$0xf]
    %v285 = vld [vmem:[%s282 + $0x8] sm:$0xf]
    %v286 = vld [vmem:[%s282 + $0xc] sm:$0xf]
    %v287 = vld [vmem:[#allocation2] sm:$0xff]
    %v292 = vunpack.c.l.b16 %v268
    %v293 = vunpack.c.l.b16 %v269
    %v294 = vunpack.c.l.b16 %v270
    %v295 = vunpack.c.l.b16 %v271
    %v296 = vpack.c.b16 %v293, %v292
    %v297 = vpack.c.b16 %v295, %v294
    %v301 = vsel %vm103, 0, 0
    %303 = vmatpush.bf16.msra.mxu0 0
    %304 = vmatpush.bf16.msra.mxu0 0
    %305 = vmatpush.bf16.msra.mxu0 0
    %306 = vmatpush.bf16.msra.mxu0 0
    %307 = vmatpush.bf16.msra.mxu0 0
    %308 = vmatpush.bf16.msra.mxu0 0
    %309 = vmatpush.bf16.msra.mxu0 %v297
    %310 = vmatpush.bf16.msra.mxu0 %v296
    %311 = vmatmul.bf16.gmra.mxu0 %v301
    %v312 = vpop.f32.mrf.mxu0
    %v313 = vadd.f32 0.0, %v312
    %v314 = vpop.f32.mrf.mxu0
    %315 = vdwg.mxu0
    %v316 = vadd.f32 %v287, %v313
    %s317 = sadd.s32 0, 64
    %s318 = scalar_lea.vmem [#allocation2], %s317
    %v319 = vld [vmem:[%s318] sm:$0xff]
    %v324 = vunpack.c.l.b16 %v273
    %v325 = vunpack.c.l.b16 %v274
    %v326 = vunpack.c.l.b16 %v275
    %v327 = vunpack.c.l.b16 %v276
    %v328 = vpack.c.b16 %v325, %v324
    %v329 = vpack.c.b16 %v327, %v326
    %332 = vmatpush.bf16.msra.mxu0 0
    %333 = vmatpush.bf16.msra.mxu0 0
    %334 = vmatpush.bf16.msra.mxu0 0
    %335 = vmatpush.bf16.msra.mxu0 0
    %336 = vmatpush.bf16.msra.mxu0 0
    %337 = vmatpush.bf16.msra.mxu0 0
    %338 = vmatpush.bf16.msra.mxu0 %v329
    %339 = vmatpush.bf16.msra.mxu0 %v328
    %340 = vmatmul.bf16.gmra.mxu0 %v301
    %v341 = vpop.f32.mrf.mxu0
    %v342 = vadd.f32 0.0, %v341
    %v343 = vpop.f32.mrf.mxu0
    %344 = vdwg.mxu0
    %v345 = vadd.f32 %v319, %v342
    %s346 = sadd.s32 0, 128
    %s347 = scalar_lea.vmem [#allocation2], %s346
    %v348 = vld [vmem:[%s347] sm:$0xff]
    %v353 = vunpack.c.l.b16 %v278
    %v354 = vunpack.c.l.b16 %v279
    %v355 = vunpack.c.l.b16 %v280
    %v356 = vunpack.c.l.b16 %v281
    %v357 = vpack.c.b16 %v354, %v353
    %v358 = vpack.c.b16 %v356, %v355
    %361 = vmatpush.bf16.msra.mxu0 0
    %362 = vmatpush.bf16.msra.mxu0 0
    %363 = vmatpush.bf16.msra.mxu0 0
    %364 = vmatpush.bf16.msra.mxu0 0
    %365 = vmatpush.bf16.msra.mxu0 0
    %366 = vmatpush.bf16.msra.mxu0 0
    %367 = vmatpush.bf16.msra.mxu0 %v358
    %368 = vmatpush.bf16.msra.mxu0 %v357
    %369 = vmatmul.bf16.gmra.mxu0 %v301
    %v370 = vpop.f32.mrf.mxu0
    %v371 = vadd.f32 0.0, %v370
    %v372 = vpop.f32.mrf.mxu0
    %373 = vdwg.mxu0
    %v374 = vadd.f32 %v348, %v371
    %s375 = sadd.s32 0, 192
    %s376 = scalar_lea.vmem [#allocation2], %s375
    %v377 = vld [vmem:[%s376] sm:$0xff]
    %v382 = vunpack.c.l.b16 %v283
    %v383 = vunpack.c.l.b16 %v284
    %v384 = vunpack.c.l.b16 %v285
    %v385 = vunpack.c.l.b16 %v286
    %v386 = vpack.c.b16 %v383, %v382
    %v387 = vpack.c.b16 %v385, %v384
    %390 = vmatpush.bf16.msra.mxu0 0
    %391 = vmatpush.bf16.msra.mxu0 0
    %392 = vmatpush.bf16.msra.mxu0 0
    %393 = vmatpush.bf16.msra.mxu0 0
    %394 = vmatpush.bf16.msra.mxu0 0
    %395 = vmatpush.bf16.msra.mxu0 0
    %396 = vmatpush.bf16.msra.mxu0 %v387
    %397 = vmatpush.bf16.msra.mxu0 %v386
    %398 = vmatmul.bf16.gmra.mxu0 %v301
    %v399 = vpop.f32.mrf.mxu0
    %v400 = vadd.f32 0.0, %v399
    %v401 = vpop.f32.mrf.mxu0
    %402 = vdwg.mxu0
    %v403 = vadd.f32 %v377, %v400
    %v404 = vxor.u32 %v316, 2147483648
    %v405 = vmul.f32 %v404, 1.442695
    %v406 = vpow.pop %v405
    %v407 = vadd.f32 %v406, 1.0
    %v408 = vrcp.pop %v407
    %v409 = vmul.f32 %v407, %v408
    %v410 = vsub.f32 1.0, %v409
    %v411 = vmul.f32 %v408, %v410
    %v412 = vadd.f32 %v408, %v411
    %vm413 = vweird.f32 %v407
    %vm414 = vweird.f32 %v408
    %vm415 = vmor %vm413, %vm414
    %v416 = vsel %vm415, %v408, %v412
    %v417 = vand.u32 2147483647, %v407
    %vm418 = vcmp.eq.f32.partialorder %v417, 8.507059e+37
    %v419 = vand.u32 %v407, 2147483648
    %v420 = vor.u32 1.1754944e-38, %v419
    %v421 = vsel %vm418, %v420, %v416
    %v422 = vmul.f32 1.0, %v421
    %v423 = vxor.u32 %v345, 2147483648
    %v424 = vmul.f32 %v423, 1.442695
    %v425 = vpow.pop %v424
    %v426 = vadd.f32 %v425, 1.0
    %v427 = vrcp.pop %v426
    %v428 = vmul.f32 %v426, %v427
    %v429 = vsub.f32 1.0, %v428
    %v430 = vmul.f32 %v427, %v429
    %v431 = vadd.f32 %v427, %v430
    %vm432 = vweird.f32 %v426
    %vm433 = vweird.f32 %v427
    %vm434 = vmor %vm432, %vm433
    %v435 = vsel %vm434, %v427, %v431
    %v436 = vand.u32 2147483647, %v426
    %vm437 = vcmp.eq.f32.partialorder %v436, 8.507059e+37
    %v438 = vand.u32 %v426, 2147483648
    %v439 = vor.u32 1.1754944e-38, %v438
    %v440 = vsel %vm437, %v439, %v435
    %v441 = vmul.f32 1.0, %v440
    %v442 = vtanh.pop %v374
    %v443 = vxor.u32 %v403, 2147483648
    %v444 = vmul.f32 %v443, 1.442695
    %v445 = vpow.pop %v444
    %v446 = vadd.f32 %v445, 1.0
    %v447 = vrcp.pop %v446
    %v448 = vmul.f32 %v446, %v447
    %v449 = vsub.f32 1.0, %v448
    %v450 = vmul.f32 %v447, %v449
    %v451 = vadd.f32 %v447, %v450
    %vm452 = vweird.f32 %v446
    %vm453 = vweird.f32 %v447
    %vm454 = vmor %vm452, %vm453
    %v455 = vsel %vm454, %v447, %v451
    %v456 = vand.u32 2147483647, %v446
    %vm457 = vcmp.eq.f32.partialorder %v456, 8.507059e+37
    %v458 = vand.u32 %v446, 2147483648
    %v459 = vor.u32 1.1754944e-38, %v458
    %v460 = vsel %vm457, %v459, %v455
    %v461 = vmul.f32 1.0, %v460
    %v462 = vmul.f32 %v441, 0.0
    %v463 = vmul.f32 %v422, %v442
    %v464 = vadd.f32 %v462, %v463
    %v465 = vtanh.pop %v464
    %v466 = vmul.f32 %v461, %v465
    %467 = vst.msk [vmem:[%s4] sm:$0xff] %vm103, %v466
    %v468 = vpack.c.bf16 %v466, %v466
    %s469 = scalar_lea.vmem [#allocation2], 8
    %v470 = vld [vmem:[%s469] sm:$0xff]
    %v472 = vsel %vm103, %v468, 0
    %474 = vmatpush.bf16.msra.mxu0 0
    %475 = vmatpush.bf16.msra.mxu0 0
    %476 = vmatpush.bf16.msra.mxu0 0
    %477 = vmatpush.bf16.msra.mxu0 0
    %478 = vmatpush.bf16.msra.mxu0 0
    %479 = vmatpush.bf16.msra.mxu0 0
    %480 = vmatpush.bf16.msra.mxu0 %v297
    %481 = vmatpush.bf16.msra.mxu0 %v296
    %482 = vmatmul.bf16.gmra.mxu0 %v472
    %v483 = vpop.f32.mrf.mxu0
    %v484 = vadd.f32 0.0, %v483
    %v485 = vpop.f32.mrf.mxu0
    %486 = vdwg.mxu0
    %v487 = vadd.f32 %v470, %v484
    %s488 = sadd.s32 8, 64
    %s489 = scalar_lea.vmem [#allocation2], %s488
    %v490 = vld [vmem:[%s489] sm:$0xff]
    %491 = vmatpush.bf16.msra.mxu0 0
    %492 = vmatpush.bf16.msra.mxu0 0
    %493 = vmatpush.bf16.msra.mxu0 0
    %494 = vmatpush.bf16.msra.mxu0 0
    %495 = vmatpush.bf16.msra.mxu0 0
    %496 = vmatpush.bf16.msra.mxu0 0
    %497 = vmatpush.bf16.msra.mxu0 %v329
    %498 = vmatpush.bf16.msra.mxu0 %v328
    %499 = vmatmul.bf16.gmra.mxu0 %v472
    %v500 = vpop.f32.mrf.mxu0
    %v501 = vadd.f32 0.0, %v500
    %v502 = vpop.f32.mrf.mxu0
    %503 = vdwg.mxu0
    %v504 = vadd.f32 %v490, %v501
    %s505 = sadd.s32 8, 128
    %s506 = scalar_lea.vmem [#allocation2], %s505
    %v507 = vld [vmem:[%s506] sm:$0xff]
    %508 = vmatpush.bf16.msra.mxu0 0
    %509 = vmatpush.bf16.msra.mxu0 0
    %510 = vmatpush.bf16.msra.mxu0 0
    %511 = vmatpush.bf16.msra.mxu0 0
    %512 = vmatpush.bf16.msra.mxu0 0
    %513 = vmatpush.bf16.msra.mxu0 0
    %514 = vmatpush.bf16.msra.mxu0 %v358
    %515 = vmatpush.bf16.msra.mxu0 %v357
    %516 = vmatmul.bf16.gmra.mxu0 %v472
    %v517 = vpop.f32.mrf.mxu0
    %v518 = vadd.f32 0.0, %v517
    %v519 = vpop.f32.mrf.mxu0
    %520 = vdwg.mxu0
    %v521 = vadd.f32 %v507, %v518
    %s522 = sadd.s32 8, 192
    %s523 = scalar_lea.vmem [#allocation2], %s522
    %v524 = vld [vmem:[%s523] sm:$0xff]
    %525 = vmatpush.bf16.msra.mxu0 0
    %526 = vmatpush.bf16.msra.mxu0 0
    %527 = vmatpush.bf16.msra.mxu0 0
    %528 = vmatpush.bf16.msra.mxu0 0
    %529 = vmatpush.bf16.msra.mxu0 0
    %530 = vmatpush.bf16.msra.mxu0 0
    %531 = vmatpush.bf16.msra.mxu0 %v387
    %532 = vmatpush.bf16.msra.mxu0 %v386
    %533 = vmatmul.bf16.gmra.mxu0 %v472
    %v534 = vpop.f32.mrf.mxu0
    %v535 = vadd.f32 0.0, %v534
    %v536 = vpop.f32.mrf.mxu0
    %537 = vdwg.mxu0
    %v538 = vadd.f32 %v524, %v535
    %v539 = vxor.u32 %v487, 2147483648
    %v540 = vmul.f32 %v539, 1.442695
    %v541 = vpow.pop %v540
    %v542 = vadd.f32 %v541, 1.0
    %v543 = vrcp.pop %v542
    %v544 = vmul.f32 %v542, %v543
    %v545 = vsub.f32 1.0, %v544
    %v546 = vmul.f32 %v543, %v545
    %v547 = vadd.f32 %v543, %v546
    %vm548 = vweird.f32 %v542
    %vm549 = vweird.f32 %v543
    %vm550 = vmor %vm548, %vm549
    %v551 = vsel %vm550, %v543, %v547
    %v552 = vand.u32 2147483647, %v542
    %vm553 = vcmp.eq.f32.partialorder %v552, 8.507059e+37
    %v554 = vand.u32 %v542, 2147483648
    %v555 = vor.u32 1.1754944e-38, %v554
    %v556 = vsel %vm553, %v555, %v551
    %v557 = vmul.f32 1.0, %v556
    %v558 = vxor.u32 %v504, 2147483648
    %v559 = vmul.f32 %v558, 1.442695
    %v560 = vpow.pop %v559
    %v561 = vadd.f32 %v560, 1.0
    %v562 = vrcp.pop %v561
    %v563 = vmul.f32 %v561, %v562
    %v564 = vsub.f32 1.0, %v563
    %v565 = vmul.f32 %v562, %v564
    %v566 = vadd.f32 %v562, %v565
    %vm567 = vweird.f32 %v561
    %vm568 = vweird.f32 %v562
    %vm569 = vmor %vm567, %vm568
    %v570 = vsel %vm569, %v562, %v566
    %v571 = vand.u32 2147483647, %v561
    %vm572 = vcmp.eq.f32.partialorder %v571, 8.507059e+37
    %v573 = vand.u32 %v561, 2147483648
    %v574 = vor.u32 1.1754944e-38, %v573
    %v575 = vsel %vm572, %v574, %v570
    %v576 = vmul.f32 1.0, %v575
    %v577 = vtanh.pop %v521
    %v578 = vxor.u32 %v538, 2147483648
    %v579 = vmul.f32 %v578, 1.442695
    %v580 = vpow.pop %v579
    %v581 = vadd.f32 %v580, 1.0
    %v582 = vrcp.pop %v581
    %v583 = vmul.f32 %v581, %v582
    %v584 = vsub.f32 1.0, %v583
    %v585 = vmul.f32 %v582, %v584
    %v586 = vadd.f32 %v582, %v585
    %vm587 = vweird.f32 %v581
    %vm588 = vweird.f32 %v582
    %vm589 = vmor %vm587, %vm588
    %v590 = vsel %vm589, %v582, %v586
    %v591 = vand.u32 2147483647, %v581
    %vm592 = vcmp.eq.f32.partialorder %v591, 8.507059e+37
    %v593 = vand.u32 %v581, 2147483648
    %v594 = vor.u32 1.1754944e-38, %v593
    %v595 = vsel %vm592, %v594, %v590
    %v596 = vmul.f32 1.0, %v595
    %v597 = vmul.f32 %v576, %v464
    %v598 = vmul.f32 %v557, %v577
    %v599 = vadd.f32 %v597, %v598
    %v600 = vtanh.pop %v599
    %v601 = vmul.f32 %v596, %v600
    %s602 = scalar_lea.vmem %s4, 8
    %603 = vst.msk [vmem:[%s602] sm:$0xff] %vm103, %v601
    %v604 = vpack.c.bf16 %v601, %v601
    %s605 = scalar_lea.vmem [#allocation2], 16
    %v606 = vld [vmem:[%s605] sm:$0xff]
    %v608 = vsel %vm103, %v604, 0
    %610 = vmatpush.bf16.msra.mxu0 0
    %611 = vmatpush.bf16.msra.mxu0 0
    %612 = vmatpush.bf16.msra.mxu0 0
    %613 = vmatpush.bf16.msra.mxu0 0
    %614 = vmatpush.bf16.msra.mxu0 0
    %615 = vmatpush.bf16.msra.mxu0 0
    %616 = vmatpush.bf16.msra.mxu0 %v297
    %617 = vmatpush.bf16.msra.mxu0 %v296
    %618 = vmatmul.bf16.gmra.mxu0 %v608
    %v619 = vpop.f32.mrf.mxu0
    %v620 = vadd.f32 0.0, %v619
    %v621 = vpop.f32.mrf.mxu0
    %622 = vdwg.mxu0
    %v623 = vadd.f32 %v606, %v620
    %s624 = sadd.s32 16, 64
    %s625 = scalar_lea.vmem [#allocation2], %s624
    %v626 = vld [vmem:[%s625] sm:$0xff]
    %627 = vmatpush.bf16.msra.mxu0 0
    %628 = vmatpush.bf16.msra.mxu0 0
    %629 = vmatpush.bf16.msra.mxu0 0
    %630 = vmatpush.bf16.msra.mxu0 0
    %631 = vmatpush.bf16.msra.mxu0 0
    %632 = vmatpush.bf16.msra.mxu0 0
    %633 = vmatpush.bf16.msra.mxu0 %v329
    %634 = vmatpush.bf16.msra.mxu0 %v328
    %635 = vmatmul.bf16.gmra.mxu0 %v608
    %v636 = vpop.f32.mrf.mxu0
    %v637 = vadd.f32 0.0, %v636
    %v638 = vpop.f32.mrf.mxu0
    %639 = vdwg.mxu0
    %v640 = vadd.f32 %v626, %v637
    %s641 = sadd.s32 16, 128
    %s642 = scalar_lea.vmem [#allocation2], %s641
    %v643 = vld [vmem:[%s642] sm:$0xff]
    %644 = vmatpush.bf16.msra.mxu0 0
    %645 = vmatpush.bf16.msra.mxu0 0
    %646 = vmatpush.bf16.msra.mxu0 0
    %647 = vmatpush.bf16.msra.mxu0 0
    %648 = vmatpush.bf16.msra.mxu0 0
    %649 = vmatpush.bf16.msra.mxu0 0
    %650 = vmatpush.bf16.msra.mxu0 %v358
    %651 = vmatpush.bf16.msra.mxu0 %v357
    %652 = vmatmul.bf16.gmra.mxu0 %v608
    %v653 = vpop.f32.mrf.mxu0
    %v654 = vadd.f32 0.0, %v653
    %v655 = vpop.f32.mrf.mxu0
    %656 = vdwg.mxu0
    %v657 = vadd.f32 %v643, %v654
    %s658 = sadd.s32 16, 192
    %s659 = scalar_lea.vmem [#allocation2], %s658
    %v660 = vld [vmem:[%s659] sm:$0xff]
    %661 = vmatpush.bf16.msra.mxu0 0
    %662 = vmatpush.bf16.msra.mxu0 0
    %663 = vmatpush.bf16.msra.mxu0 0
    %664 = vmatpush.bf16.msra.mxu0 0
    %665 = vmatpush.bf16.msra.mxu0 0
    %666 = vmatpush.bf16.msra.mxu0 0
    %667 = vmatpush.bf16.msra.mxu0 %v387
    %668 = vmatpush.bf16.msra.mxu0 %v386
    %669 = vmatmul.bf16.gmra.mxu0 %v608
    %v670 = vpop.f32.mrf.mxu0
    %v671 = vadd.f32 0.0, %v670
    %v672 = vpop.f32.mrf.mxu0
    %673 = vdwg.mxu0
    %v674 = vadd.f32 %v660, %v671
    %v675 = vxor.u32 %v623, 2147483648
    %v676 = vmul.f32 %v675, 1.442695
    %v677 = vpow.pop %v676
    %v678 = vadd.f32 %v677, 1.0
    %v679 = vrcp.pop %v678
    %v680 = vmul.f32 %v678, %v679
    %v681 = vsub.f32 1.0, %v680
    %v682 = vmul.f32 %v679, %v681
    %v683 = vadd.f32 %v679, %v682
    %vm684 = vweird.f32 %v678
    %vm685 = vweird.f32 %v679
    %vm686 = vmor %vm684, %vm685
    %v687 = vsel %vm686, %v679, %v683
    %v688 = vand.u32 2147483647, %v678
    %vm689 = vcmp.eq.f32.partialorder %v688, 8.507059e+37
    %v690 = vand.u32 %v678, 2147483648
    %v691 = vor.u32 1.1754944e-38, %v690
    %v692 = vsel %vm689, %v691, %v687
    %v693 = vmul.f32 1.0, %v692
    %v694 = vxor.u32 %v640, 2147483648
    %v695 = vmul.f32 %v694, 1.442695
    %v696 = vpow.pop %v695
    %v697 = vadd.f32 %v696, 1.0
    %v698 = vrcp.pop %v697
    %v699 = vmul.f32 %v697, %v698
    %v700 = vsub.f32 1.0, %v699
    %v701 = vmul.f32 %v698, %v700
    %v702 = vadd.f32 %v698, %v701
    %vm703 = vweird.f32 %v697
    %vm704 = vweird.f32 %v698
    %vm705 = vmor %vm703, %vm704
    %v706 = vsel %vm705, %v698, %v702
    %v707 = vand.u32 2147483647, %v697
    %vm708 = vcmp.eq.f32.partialorder %v707, 8.507059e+37
    %v709 = vand.u32 %v697, 2147483648
    %v710 = vor.u32 1.1754944e-38, %v709
    %v711 = vsel %vm708, %v710, %v706
    %v712 = vmul.f32 1.0, %v711
    %v713 = vtanh.pop %v657
    %v714 = vxor.u32 %v674, 2147483648
    %v715 = vmul.f32 %v714, 1.442695
    %v716 = vpow.pop %v715
    %v717 = vadd.f32 %v716, 1.0
    %v718 = vrcp.pop %v717
    %v719 = vmul.f32 %v717, %v718
    %v720 = vsub.f32 1.0, %v719
    %v721 = vmul.f32 %v718, %v720
    %v722 = vadd.f32 %v718, %v721
    %vm723 = vweird.f32 %v717
    %vm724 = vweird.f32 %v718
    %vm725 = vmor %vm723, %vm724
    %v726 = vsel %vm725, %v718, %v722
    %v727 = vand.u32 2147483647, %v717
    %vm728 = vcmp.eq.f32.partialorder %v727, 8.507059e+37
    %v729 = vand.u32 %v717, 2147483648
    %v730 = vor.u32 1.1754944e-38, %v729
    %v731 = vsel %vm728, %v730, %v726
    %v732 = vmul.f32 1.0, %v731
    %v733 = vmul.f32 %v712, %v599
    %v734 = vmul.f32 %v693, %v713
    %v735 = vadd.f32 %v733, %v734
    %v736 = vtanh.pop %v735
    %v737 = vmul.f32 %v732, %v736
    %s738 = scalar_lea.vmem %s4, 16
    %739 = vst.msk [vmem:[%s738] sm:$0xff] %vm103, %v737
    %v740 = vpack.c.bf16 %v737, %v737
    %s741 = scalar_lea.vmem [#allocation2], 24
    %v742 = vld [vmem:[%s741] sm:$0xff]
    %v744 = vsel %vm103, %v740, 0
    %746 = vmatpush.bf16.msra.mxu0 0
    %747 = vmatpush.bf16.msra.mxu0 0
    %748 = vmatpush.bf16.msra.mxu0 0
    %749 = vmatpush.bf16.msra.mxu0 0
    %750 = vmatpush.bf16.msra.mxu0 0
    %751 = vmatpush.bf16.msra.mxu0 0
    %752 = vmatpush.bf16.msra.mxu0 %v297
    %753 = vmatpush.bf16.msra.mxu0 %v296
    %754 = vmatmul.bf16.gmra.mxu0 %v744
    %v755 = vpop.f32.mrf.mxu0
    %v756 = vadd.f32 0.0, %v755
    %v757 = vpop.f32.mrf.mxu0
    %758 = vdwg.mxu0
    %v759 = vadd.f32 %v742, %v756
    %s760 = sadd.s32 24, 64
    %s761 = scalar_lea.vmem [#allocation2], %s760
    %v762 = vld [vmem:[%s761] sm:$0xff]
    %763 = vmatpush.bf16.msra.mxu0 0
    %764 = vmatpush.bf16.msra.mxu0 0
    %765 = vmatpush.bf16.msra.mxu0 0
    %766 = vmatpush.bf16.msra.mxu0 0
    %767 = vmatpush.bf16.msra.mxu0 0
    %768 = vmatpush.bf16.msra.mxu0 0
    %769 = vmatpush.bf16.msra.mxu0 %v329
    %770 = vmatpush.bf16.msra.mxu0 %v328
    %771 = vmatmul.bf16.gmra.mxu0 %v744
    %v772 = vpop.f32.mrf.mxu0
    %v773 = vadd.f32 0.0, %v772
    %v774 = vpop.f32.mrf.mxu0
    %775 = vdwg.mxu0
    %v776 = vadd.f32 %v762, %v773
    %s777 = sadd.s32 24, 128
    %s778 = scalar_lea.vmem [#allocation2], %s777
    %v779 = vld [vmem:[%s778] sm:$0xff]
    %780 = vmatpush.bf16.msra.mxu0 0
    %781 = vmatpush.bf16.msra.mxu0 0
    %782 = vmatpush.bf16.msra.mxu0 0
    %783 = vmatpush.bf16.msra.mxu0 0
    %784 = vmatpush.bf16.msra.mxu0 0
    %785 = vmatpush.bf16.msra.mxu0 0
    %786 = vmatpush.bf16.msra.mxu0 %v358
    %787 = vmatpush.bf16.msra.mxu0 %v357
    %788 = vmatmul.bf16.gmra.mxu0 %v744
    %v789 = vpop.f32.mrf.mxu0
    %v790 = vadd.f32 0.0, %v789
    %v791 = vpop.f32.mrf.mxu0
    %792 = vdwg.mxu0
    %v793 = vadd.f32 %v779, %v790
    %s794 = sadd.s32 24, 192
    %s795 = scalar_lea.vmem [#allocation2], %s794
    %v796 = vld [vmem:[%s795] sm:$0xff]
    %797 = vmatpush.bf16.msra.mxu0 0
    %798 = vmatpush.bf16.msra.mxu0 0
    %799 = vmatpush.bf16.msra.mxu0 0
    %800 = vmatpush.bf16.msra.mxu0 0
    %801 = vmatpush.bf16.msra.mxu0 0
    %802 = vmatpush.bf16.msra.mxu0 0
    %803 = vmatpush.bf16.msra.mxu0 %v387
    %804 = vmatpush.bf16.msra.mxu0 %v386
    %805 = vmatmul.bf16.gmra.mxu0 %v744
    %v806 = vpop.f32.mrf.mxu0
    %v807 = vadd.f32 0.0, %v806
    %v808 = vpop.f32.mrf.mxu0
    %809 = vdwg.mxu0
    %v810 = vadd.f32 %v796, %v807
    %v811 = vxor.u32 %v759, 2147483648
    %v812 = vmul.f32 %v811, 1.442695
    %v813 = vpow.pop %v812
    %v814 = vadd.f32 %v813, 1.0
    %v815 = vrcp.pop %v814
    %v816 = vmul.f32 %v814, %v815
    %v817 = vsub.f32 1.0, %v816
    %v818 = vmul.f32 %v815, %v817
    %v819 = vadd.f32 %v815, %v818
    %vm820 = vweird.f32 %v814
    %vm821 = vweird.f32 %v815
    %vm822 = vmor %vm820, %vm821
    %v823 = vsel %vm822, %v815, %v819
    %v824 = vand.u32 2147483647, %v814
    %vm825 = vcmp.eq.f32.partialorder %v824, 8.507059e+37
    %v826 = vand.u32 %v814, 2147483648
    %v827 = vor.u32 1.1754944e-38, %v826
    %v828 = vsel %vm825, %v827, %v823
    %v829 = vmul.f32 1.0, %v828
    %v830 = vxor.u32 %v776, 2147483648
    %v831 = vmul.f32 %v830, 1.442695
    %v832 = vpow.pop %v831
    %v833 = vadd.f32 %v832, 1.0
    %v834 = vrcp.pop %v833
    %v835 = vmul.f32 %v833, %v834
    %v836 = vsub.f32 1.0, %v835
    %v837 = vmul.f32 %v834, %v836
    %v838 = vadd.f32 %v834, %v837
    %vm839 = vweird.f32 %v833
    %vm840 = vweird.f32 %v834
    %vm841 = vmor %vm839, %vm840
    %v842 = vsel %vm841, %v834, %v838
    %v843 = vand.u32 2147483647, %v833
    %vm844 = vcmp.eq.f32.partialorder %v843, 8.507059e+37
    %v845 = vand.u32 %v833, 2147483648
    %v846 = vor.u32 1.1754944e-38, %v845
    %v847 = vsel %vm844, %v846, %v842
    %v848 = vmul.f32 1.0, %v847
    %v849 = vtanh.pop %v793
    %v850 = vxor.u32 %v810, 2147483648
    %v851 = vmul.f32 %v850, 1.442695
    %v852 = vpow.pop %v851
    %v853 = vadd.f32 %v852, 1.0
    %v854 = vrcp.pop %v853
    %v855 = vmul.f32 %v853, %v854
    %v856 = vsub.f32 1.0, %v855
    %v857 = vmul.f32 %v854, %v856
    %v858 = vadd.f32 %v854, %v857
    %vm859 = vweird.f32 %v853
    %vm860 = vweird.f32 %v854
    %vm861 = vmor %vm859, %vm860
    %v862 = vsel %vm861, %v854, %v858
    %v863 = vand.u32 2147483647, %v853
    %vm864 = vcmp.eq.f32.partialorder %v863, 8.507059e+37
    %v865 = vand.u32 %v853, 2147483648
    %v866 = vor.u32 1.1754944e-38, %v865
    %v867 = vsel %vm864, %v866, %v862
    %v868 = vmul.f32 1.0, %v867
    %v869 = vmul.f32 %v848, %v735
    %v870 = vmul.f32 %v829, %v849
    %v871 = vadd.f32 %v869, %v870
    %v872 = vtanh.pop %v871
    %v873 = vmul.f32 %v868, %v872
    %s874 = scalar_lea.vmem %s4, 24
    %875 = vst.msk [vmem:[%s874] sm:$0xff] %vm103, %v873
    %v876 = vpack.c.bf16 %v873, %v873
    %s877 = scalar_lea.vmem [#allocation2], 32
    %v878 = vld [vmem:[%s877] sm:$0xff]
    %v880 = vsel %vm103, %v876, 0
    %882 = vmatpush.bf16.msra.mxu0 0
    %883 = vmatpush.bf16.msra.mxu0 0
    %884 = vmatpush.bf16.msra.mxu0 0
    %885 = vmatpush.bf16.msra.mxu0 0
    %886 = vmatpush.bf16.msra.mxu0 0
    %887 = vmatpush.bf16.msra.mxu0 0
    %888 = vmatpush.bf16.msra.mxu0 %v297
    %889 = vmatpush.bf16.msra.mxu0 %v296
    %890 = vmatmul.bf16.gmra.mxu0 %v880
    %v891 = vpop.f32.mrf.mxu0
    %v892 = vadd.f32 0.0, %v891
    %v893 = vpop.f32.mrf.mxu0
    %894 = vdwg.mxu0
    %v895 = vadd.f32 %v878, %v892
    %s896 = sadd.s32 32, 64
    %s897 = scalar_lea.vmem [#allocation2], %s896
    %v898 = vld [vmem:[%s897] sm:$0xff]
    %899 = vmatpush.bf16.msra.mxu0 0
    %900 = vmatpush.bf16.msra.mxu0 0
    %901 = vmatpush.bf16.msra.mxu0 0
    %902 = vmatpush.bf16.msra.mxu0 0
    %903 = vmatpush.bf16.msra.mxu0 0
    %904 = vmatpush.bf16.msra.mxu0 0
    %905 = vmatpush.bf16.msra.mxu0 %v329
    %906 = vmatpush.bf16.msra.mxu0 %v328
    %907 = vmatmul.bf16.gmra.mxu0 %v880
    %v908 = vpop.f32.mrf.mxu0
    %v909 = vadd.f32 0.0, %v908
    %v910 = vpop.f32.mrf.mxu0
    %911 = vdwg.mxu0
    %v912 = vadd.f32 %v898, %v909
    %s913 = sadd.s32 32, 128
    %s914 = scalar_lea.vmem [#allocation2], %s913
    %v915 = vld [vmem:[%s914] sm:$0xff]
    %916 = vmatpush.bf16.msra.mxu0 0
    %917 = vmatpush.bf16.msra.mxu0 0
    %918 = vmatpush.bf16.msra.mxu0 0
    %919 = vmatpush.bf16.msra.mxu0 0
    %920 = vmatpush.bf16.msra.mxu0 0
    %921 = vmatpush.bf16.msra.mxu0 0
    %922 = vmatpush.bf16.msra.mxu0 %v358
    %923 = vmatpush.bf16.msra.mxu0 %v357
    %924 = vmatmul.bf16.gmra.mxu0 %v880
    %v925 = vpop.f32.mrf.mxu0
    %v926 = vadd.f32 0.0, %v925
    %v927 = vpop.f32.mrf.mxu0
    %928 = vdwg.mxu0
    %v929 = vadd.f32 %v915, %v926
    %s930 = sadd.s32 32, 192
    %s931 = scalar_lea.vmem [#allocation2], %s930
    %v932 = vld [vmem:[%s931] sm:$0xff]
    %933 = vmatpush.bf16.msra.mxu0 0
    %934 = vmatpush.bf16.msra.mxu0 0
    %935 = vmatpush.bf16.msra.mxu0 0
    %936 = vmatpush.bf16.msra.mxu0 0
    %937 = vmatpush.bf16.msra.mxu0 0
    %938 = vmatpush.bf16.msra.mxu0 0
    %939 = vmatpush.bf16.msra.mxu0 %v387
    %940 = vmatpush.bf16.msra.mxu0 %v386
    %941 = vmatmul.bf16.gmra.mxu0 %v880
    %v942 = vpop.f32.mrf.mxu0
    %v943 = vadd.f32 0.0, %v942
    %v944 = vpop.f32.mrf.mxu0
    %945 = vdwg.mxu0
    %v946 = vadd.f32 %v932, %v943
    %v947 = vxor.u32 %v895, 2147483648
    %v948 = vmul.f32 %v947, 1.442695
    %v949 = vpow.pop %v948
    %v950 = vadd.f32 %v949, 1.0
    %v951 = vrcp.pop %v950
    %v952 = vmul.f32 %v950, %v951
    %v953 = vsub.f32 1.0, %v952
    %v954 = vmul.f32 %v951, %v953
    %v955 = vadd.f32 %v951, %v954
    %vm956 = vweird.f32 %v950
    %vm957 = vweird.f32 %v951
    %vm958 = vmor %vm956, %vm957
    %v959 = vsel %vm958, %v951, %v955
    %v960 = vand.u32 2147483647, %v950
    %vm961 = vcmp.eq.f32.partialorder %v960, 8.507059e+37
    %v962 = vand.u32 %v950, 2147483648
    %v963 = vor.u32 1.1754944e-38, %v962
    %v964 = vsel %vm961, %v963, %v959
    %v965 = vmul.f32 1.0, %v964
    %v966 = vxor.u32 %v912, 2147483648
    %v967 = vmul.f32 %v966, 1.442695
    %v968 = vpow.pop %v967
    %v969 = vadd.f32 %v968, 1.0
    %v970 = vrcp.pop %v969
    %v971 = vmul.f32 %v969, %v970
    %v972 = vsub.f32 1.0, %v971
    %v973 = vmul.f32 %v970, %v972
    %v974 = vadd.f32 %v970, %v973
    %vm975 = vweird.f32 %v969
    %vm976 = vweird.f32 %v970
    %vm977 = vmor %vm975, %vm976
    %v978 = vsel %vm977, %v970, %v974
    %v979 = vand.u32 2147483647, %v969
    %vm980 = vcmp.eq.f32.partialorder %v979, 8.507059e+37
    %v981 = vand.u32 %v969, 2147483648
    %v982 = vor.u32 1.1754944e-38, %v981
    %v983 = vsel %vm980, %v982, %v978
    %v984 = vmul.f32 1.0, %v983
    %v985 = vtanh.pop %v929
    %v986 = vxor.u32 %v946, 2147483648
    %v987 = vmul.f32 %v986, 1.442695
    %v988 = vpow.pop %v987
    %v989 = vadd.f32 %v988, 1.0
    %v990 = vrcp.pop %v989
    %v991 = vmul.f32 %v989, %v990
    %v992 = vsub.f32 1.0, %v991
    %v993 = vmul.f32 %v990, %v992
    %v994 = vadd.f32 %v990, %v993
    %vm995 = vweird.f32 %v989
    %vm996 = vweird.f32 %v990
    %vm997 = vmor %vm995, %vm996
    %v998 = vsel %vm997, %v990, %v994
    %v999 = vand.u32 2147483647, %v989
    %vm1000 = vcmp.eq.f32.partialorder %v999, 8.507059e+37
    %v1001 = vand.u32 %v989, 2147483648
    %v1002 = vor.u32 1.1754944e-38, %v1001
    %v1003 = vsel %vm1000, %v1002, %v998
    %v1004 = vmul.f32 1.0, %v1003
    %v1005 = vmul.f32 %v984, %v871
    %v1006 = vmul.f32 %v965, %v985
    %v1007 = vadd.f32 %v1005, %v1006
    %v1008 = vtanh.pop %v1007
    %v1009 = vmul.f32 %v1004, %v1008
    %s1010 = scalar_lea.vmem %s4, 32
    %1011 = vst.msk [vmem:[%s1010] sm:$0xff] %vm103, %v1009
    %v1012 = vpack.c.bf16 %v1009, %v1009
    %s1013 = scalar_lea.vmem [#allocation2], 40
    %v1014 = vld [vmem:[%s1013] sm:$0xff]
    %v1016 = vsel %vm103, %v1012, 0
    %1018 = vmatpush.bf16.msra.mxu0 0
    %1019 = vmatpush.bf16.msra.mxu0 0
    %1020 = vmatpush.bf16.msra.mxu0 0
    %1021 = vmatpush.bf16.msra.mxu0 0
    %1022 = vmatpush.bf16.msra.mxu0 0
    %1023 = vmatpush.bf16.msra.mxu0 0
    %1024 = vmatpush.bf16.msra.mxu0 %v297
    %1025 = vmatpush.bf16.msra.mxu0 %v296
    %1026 = vmatmul.bf16.gmra.mxu0 %v1016
    %v1027 = vpop.f32.mrf.mxu0
    %v1028 = vadd.f32 0.0, %v1027
    %v1029 = vpop.f32.mrf.mxu0
    %1030 = vdwg.mxu0
    %v1031 = vadd.f32 %v1014, %v1028
    %s1032 = sadd.s32 40, 64
    %s1033 = scalar_lea.vmem [#allocation2], %s1032
    %v1034 = vld [vmem:[%s1033] sm:$0xff]
    %1035 = vmatpush.bf16.msra.mxu0 0
    %1036 = vmatpush.bf16.msra.mxu0 0
    %1037 = vmatpush.bf16.msra.mxu0 0
    %1038 = vmatpush.bf16.msra.mxu0 0
    %1039 = vmatpush.bf16.msra.mxu0 0
    %1040 = vmatpush.bf16.msra.mxu0 0
    %1041 = vmatpush.bf16.msra.mxu0 %v329
    %1042 = vmatpush.bf16.msra.mxu0 %v328
    %1043 = vmatmul.bf16.gmra.mxu0 %v1016
    %v1044 = vpop.f32.mrf.mxu0
    %v1045 = vadd.f32 0.0, %v1044
    %v1046 = vpop.f32.mrf.mxu0
    %1047 = vdwg.mxu0
    %v1048 = vadd.f32 %v1034, %v1045
    %s1049 = sadd.s32 40, 128
    %s1050 = scalar_lea.vmem [#allocation2], %s1049
    %v1051 = vld [vmem:[%s1050] sm:$0xff]
    %1052 = vmatpush.bf16.msra.mxu0 0
    %1053 = vmatpush.bf16.msra.mxu0 0
    %1054 = vmatpush.bf16.msra.mxu0 0
    %1055 = vmatpush.bf16.msra.mxu0 0
    %1056 = vmatpush.bf16.msra.mxu0 0
    %1057 = vmatpush.bf16.msra.mxu0 0
    %1058 = vmatpush.bf16.msra.mxu0 %v358
    %1059 = vmatpush.bf16.msra.mxu0 %v357
    %1060 = vmatmul.bf16.gmra.mxu0 %v1016
    %v1061 = vpop.f32.mrf.mxu0
    %v1062 = vadd.f32 0.0, %v1061
    %v1063 = vpop.f32.mrf.mxu0
    %1064 = vdwg.mxu0
    %v1065 = vadd.f32 %v1051, %v1062
    %s1066 = sadd.s32 40, 192
    %s1067 = scalar_lea.vmem [#allocation2], %s1066
    %v1068 = vld [vmem:[%s1067] sm:$0xff]
    %1069 = vmatpush.bf16.msra.mxu0 0
    %1070 = vmatpush.bf16.msra.mxu0 0
    %1071 = vmatpush.bf16.msra.mxu0 0
    %1072 = vmatpush.bf16.msra.mxu0 0
    %1073 = vmatpush.bf16.msra.mxu0 0
    %1074 = vmatpush.bf16.msra.mxu0 0
    %1075 = vmatpush.bf16.msra.mxu0 %v387
    %1076 = vmatpush.bf16.msra.mxu0 %v386
    %1077 = vmatmul.bf16.gmra.mxu0 %v1016
    %v1078 = vpop.f32.mrf.mxu0
    %v1079 = vadd.f32 0.0, %v1078
    %v1080 = vpop.f32.mrf.mxu0
    %1081 = vdwg.mxu0
    %v1082 = vadd.f32 %v1068, %v1079
    %v1083 = vxor.u32 %v1031, 2147483648
    %v1084 = vmul.f32 %v1083, 1.442695
    %v1085 = vpow.pop %v1084
    %v1086 = vadd.f32 %v1085, 1.0
    %v1087 = vrcp.pop %v1086
    %v1088 = vmul.f32 %v1086, %v1087
    %v1089 = vsub.f32 1.0, %v1088
    %v1090 = vmul.f32 %v1087, %v1089
    %v1091 = vadd.f32 %v1087, %v1090
    %vm1092 = vweird.f32 %v1086
    %vm1093 = vweird.f32 %v1087
    %vm1094 = vmor %vm1092, %vm1093
    %v1095 = vsel %vm1094, %v1087, %v1091
    %v1096 = vand.u32 2147483647, %v1086
    %vm1097 = vcmp.eq.f32.partialorder %v1096, 8.507059e+37
    %v1098 = vand.u32 %v1086, 2147483648
    %v1099 = vor.u32 1.1754944e-38, %v1098
    %v1100 = vsel %vm1097, %v1099, %v1095
    %v1101 = vmul.f32 1.0, %v1100
    %v1102 = vxor.u32 %v1048, 2147483648
    %v1103 = vmul.f32 %v1102, 1.442695
    %v1104 = vpow.pop %v1103
    %v1105 = vadd.f32 %v1104, 1.0
    %v1106 = vrcp.pop %v1105
    %v1107 = vmul.f32 %v1105, %v1106
    %v1108 = vsub.f32 1.0, %v1107
    %v1109 = vmul.f32 %v1106, %v1108
    %v1110 = vadd.f32 %v1106, %v1109
    %vm1111 = vweird.f32 %v1105
    %vm1112 = vweird.f32 %v1106
    %vm1113 = vmor %vm1111, %vm1112
    %v1114 = vsel %vm1113, %v1106, %v1110
    %v1115 = vand.u32 2147483647, %v1105
    %vm1116 = vcmp.eq.f32.partialorder %v1115, 8.507059e+37
    %v1117 = vand.u32 %v1105, 2147483648
    %v1118 = vor.u32 1.1754944e-38, %v1117
    %v1119 = vsel %vm1116, %v1118, %v1114
    %v1120 = vmul.f32 1.0, %v1119
    %v1121 = vtanh.pop %v1065
    %v1122 = vxor.u32 %v1082, 2147483648
    %v1123 = vmul.f32 %v1122, 1.442695
    %v1124 = vpow.pop %v1123
    %v1125 = vadd.f32 %v1124, 1.0
    %v1126 = vrcp.pop %v1125
    %v1127 = vmul.f32 %v1125, %v1126
    %v1128 = vsub.f32 1.0, %v1127
    %v1129 = vmul.f32 %v1126, %v1128
    %v1130 = vadd.f32 %v1126, %v1129
    %vm1131 = vweird.f32 %v1125
    %vm1132 = vweird.f32 %v1126
    %vm1133 = vmor %vm1131, %vm1132
    %v1134 = vsel %vm1133, %v1126, %v1130
    %v1135 = vand.u32 2147483647, %v1125
    %vm1136 = vcmp.eq.f32.partialorder %v1135, 8.507059e+37
    %v1137 = vand.u32 %v1125, 2147483648
    %v1138 = vor.u32 1.1754944e-38, %v1137
    %v1139 = vsel %vm1136, %v1138, %v1134
    %v1140 = vmul.f32 1.0, %v1139
    %v1141 = vmul.f32 %v1120, %v1007
    %v1142 = vmul.f32 %v1101, %v1121
    %v1143 = vadd.f32 %v1141, %v1142
    %v1144 = vtanh.pop %v1143
    %v1145 = vmul.f32 %v1140, %v1144
    %s1146 = scalar_lea.vmem %s4, 40
    %1147 = vst.msk [vmem:[%s1146] sm:$0xff] %vm103, %v1145
    %v1148 = vpack.c.bf16 %v1145, %v1145
    %s1149 = scalar_lea.vmem [#allocation2], 48
    %v1150 = vld [vmem:[%s1149] sm:$0xff]
    %v1152 = vsel %vm103, %v1148, 0
    %1154 = vmatpush.bf16.msra.mxu0 0
    %1155 = vmatpush.bf16.msra.mxu0 0
    %1156 = vmatpush.bf16.msra.mxu0 0
    %1157 = vmatpush.bf16.msra.mxu0 0
    %1158 = vmatpush.bf16.msra.mxu0 0
    %1159 = vmatpush.bf16.msra.mxu0 0
    %1160 = vmatpush.bf16.msra.mxu0 %v297
    %1161 = vmatpush.bf16.msra.mxu0 %v296
    %1162 = vmatmul.bf16.gmra.mxu0 %v1152
    %v1163 = vpop.f32.mrf.mxu0
    %v1164 = vadd.f32 0.0, %v1163
    %v1165 = vpop.f32.mrf.mxu0
    %1166 = vdwg.mxu0
    %v1167 = vadd.f32 %v1150, %v1164
    %s1168 = sadd.s32 48, 64
    %s1169 = scalar_lea.vmem [#allocation2], %s1168
    %v1170 = vld [vmem:[%s1169] sm:$0xff]
    %1171 = vmatpush.bf16.msra.mxu0 0
    %1172 = vmatpush.bf16.msra.mxu0 0
    %1173 = vmatpush.bf16.msra.mxu0 0
    %1174 = vmatpush.bf16.msra.mxu0 0
    %1175 = vmatpush.bf16.msra.mxu0 0
    %1176 = vmatpush.bf16.msra.mxu0 0
    %1177 = vmatpush.bf16.msra.mxu0 %v329
    %1178 = vmatpush.bf16.msra.mxu0 %v328
    %1179 = vmatmul.bf16.gmra.mxu0 %v1152
    %v1180 = vpop.f32.mrf.mxu0
    %v1181 = vadd.f32 0.0, %v1180
    %v1182 = vpop.f32.mrf.mxu0
    %1183 = vdwg.mxu0
    %v1184 = vadd.f32 %v1170, %v1181
    %s1185 = sadd.s32 48, 128
    %s1186 = scalar_lea.vmem [#allocation2], %s1185
    %v1187 = vld [vmem:[%s1186] sm:$0xff]
    %1188 = vmatpush.bf16.msra.mxu0 0
    %1189 = vmatpush.bf16.msra.mxu0 0
    %1190 = vmatpush.bf16.msra.mxu0 0
    %1191 = vmatpush.bf16.msra.mxu0 0
    %1192 = vmatpush.bf16.msra.mxu0 0
    %1193 = vmatpush.bf16.msra.mxu0 0
    %1194 = vmatpush.bf16.msra.mxu0 %v358
    %1195 = vmatpush.bf16.msra.mxu0 %v357
    %1196 = vmatmul.bf16.gmra.mxu0 %v1152
    %v1197 = vpop.f32.mrf.mxu0
    %v1198 = vadd.f32 0.0, %v1197
    %v1199 = vpop.f32.mrf.mxu0
    %1200 = vdwg.mxu0
    %v1201 = vadd.f32 %v1187, %v1198
    %s1202 = sadd.s32 48, 192
    %s1203 = scalar_lea.vmem [#allocation2], %s1202
    %v1204 = vld [vmem:[%s1203] sm:$0xff]
    %1205 = vmatpush.bf16.msra.mxu0 0
    %1206 = vmatpush.bf16.msra.mxu0 0
    %1207 = vmatpush.bf16.msra.mxu0 0
    %1208 = vmatpush.bf16.msra.mxu0 0
    %1209 = vmatpush.bf16.msra.mxu0 0
    %1210 = vmatpush.bf16.msra.mxu0 0
    %1211 = vmatpush.bf16.msra.mxu0 %v387
    %1212 = vmatpush.bf16.msra.mxu0 %v386
    %1213 = vmatmul.bf16.gmra.mxu0 %v1152
    %v1214 = vpop.f32.mrf.mxu0
    %v1215 = vadd.f32 0.0, %v1214
    %v1216 = vpop.f32.mrf.mxu0
    %1217 = vdwg.mxu0
    %v1218 = vadd.f32 %v1204, %v1215
    %v1219 = vxor.u32 %v1167, 2147483648
    %v1220 = vmul.f32 %v1219, 1.442695
    %v1221 = vpow.pop %v1220
    %v1222 = vadd.f32 %v1221, 1.0
    %v1223 = vrcp.pop %v1222
    %v1224 = vmul.f32 %v1222, %v1223
    %v1225 = vsub.f32 1.0, %v1224
    %v1226 = vmul.f32 %v1223, %v1225
    %v1227 = vadd.f32 %v1223, %v1226
    %vm1228 = vweird.f32 %v1222
    %vm1229 = vweird.f32 %v1223
    %vm1230 = vmor %vm1228, %vm1229
    %v1231 = vsel %vm1230, %v1223, %v1227
    %v1232 = vand.u32 2147483647, %v1222
    %vm1233 = vcmp.eq.f32.partialorder %v1232, 8.507059e+37
    %v1234 = vand.u32 %v1222, 2147483648
    %v1235 = vor.u32 1.1754944e-38, %v1234
    %v1236 = vsel %vm1233, %v1235, %v1231
    %v1237 = vmul.f32 1.0, %v1236
    %v1238 = vxor.u32 %v1184, 2147483648
    %v1239 = vmul.f32 %v1238, 1.442695
    %v1240 = vpow.pop %v1239
    %v1241 = vadd.f32 %v1240, 1.0
    %v1242 = vrcp.pop %v1241
    %v1243 = vmul.f32 %v1241, %v1242
    %v1244 = vsub.f32 1.0, %v1243
    %v1245 = vmul.f32 %v1242, %v1244
    %v1246 = vadd.f32 %v1242, %v1245
    %vm1247 = vweird.f32 %v1241
    %vm1248 = vweird.f32 %v1242
    %vm1249 = vmor %vm1247, %vm1248
    %v1250 = vsel %vm1249, %v1242, %v1246
    %v1251 = vand.u32 2147483647, %v1241
    %vm1252 = vcmp.eq.f32.partialorder %v1251, 8.507059e+37
    %v1253 = vand.u32 %v1241, 2147483648
    %v1254 = vor.u32 1.1754944e-38, %v1253
    %v1255 = vsel %vm1252, %v1254, %v1250
    %v1256 = vmul.f32 1.0, %v1255
    %v1257 = vtanh.pop %v1201
    %v1258 = vxor.u32 %v1218, 2147483648
    %v1259 = vmul.f32 %v1258, 1.442695
    %v1260 = vpow.pop %v1259
    %v1261 = vadd.f32 %v1260, 1.0
    %v1262 = vrcp.pop %v1261
    %v1263 = vmul.f32 %v1261, %v1262
    %v1264 = vsub.f32 1.0, %v1263
    %v1265 = vmul.f32 %v1262, %v1264
    %v1266 = vadd.f32 %v1262, %v1265
    %vm1267 = vweird.f32 %v1261
    %vm1268 = vweird.f32 %v1262
    %vm1269 = vmor %vm1267, %vm1268
    %v1270 = vsel %vm1269, %v1262, %v1266
    %v1271 = vand.u32 2147483647, %v1261
    %vm1272 = vcmp.eq.f32.partialorder %v1271, 8.507059e+37
    %v1273 = vand.u32 %v1261, 2147483648
    %v1274 = vor.u32 1.1754944e-38, %v1273
    %v1275 = vsel %vm1272, %v1274, %v1270
    %v1276 = vmul.f32 1.0, %v1275
    %v1277 = vmul.f32 %v1256, %v1143
    %v1278 = vmul.f32 %v1237, %v1257
    %v1279 = vadd.f32 %v1277, %v1278
    %v1280 = vtanh.pop %v1279
    %v1281 = vmul.f32 %v1276, %v1280
    %s1282 = scalar_lea.vmem %s4, 48
    %1283 = vst.msk [vmem:[%s1282] sm:$0xff] %vm103, %v1281
    %v1284 = vpack.c.bf16 %v1281, %v1281
    %s1285 = scalar_lea.vmem [#allocation2], 56
    %v1286 = vld [vmem:[%s1285] sm:$0xff]
    %v1288 = vsel %vm103, %v1284, 0
    %1290 = vmatpush.bf16.msra.mxu0 0
    %1291 = vmatpush.bf16.msra.mxu0 0
    %1292 = vmatpush.bf16.msra.mxu0 0
    %1293 = vmatpush.bf16.msra.mxu0 0
    %1294 = vmatpush.bf16.msra.mxu0 0
    %1295 = vmatpush.bf16.msra.mxu0 0
    %1296 = vmatpush.bf16.msra.mxu0 %v297
    %1297 = vmatpush.bf16.msra.mxu0 %v296
    %1298 = vmatmul.bf16.gmra.mxu0 %v1288
    %v1299 = vpop.f32.mrf.mxu0
    %v1300 = vadd.f32 0.0, %v1299
    %v1301 = vpop.f32.mrf.mxu0
    %1302 = vdwg.mxu0
    %v1303 = vadd.f32 %v1286, %v1300
    %s1304 = sadd.s32 56, 64
    %s1305 = scalar_lea.vmem [#allocation2], %s1304
    %v1306 = vld [vmem:[%s1305] sm:$0xff]
    %1307 = vmatpush.bf16.msra.mxu0 0
    %1308 = vmatpush.bf16.msra.mxu0 0
    %1309 = vmatpush.bf16.msra.mxu0 0
    %1310 = vmatpush.bf16.msra.mxu0 0
    %1311 = vmatpush.bf16.msra.mxu0 0
    %1312 = vmatpush.bf16.msra.mxu0 0
    %1313 = vmatpush.bf16.msra.mxu0 %v329
    %1314 = vmatpush.bf16.msra.mxu0 %v328
    %1315 = vmatmul.bf16.gmra.mxu0 %v1288
    %v1316 = vpop.f32.mrf.mxu0
    %v1317 = vadd.f32 0.0, %v1316
    %v1318 = vpop.f32.mrf.mxu0
    %1319 = vdwg.mxu0
    %v1320 = vadd.f32 %v1306, %v1317
    %s1321 = sadd.s32 56, 128
    %s1322 = scalar_lea.vmem [#allocation2], %s1321
    %v1323 = vld [vmem:[%s1322] sm:$0xff]
    %1324 = vmatpush.bf16.msra.mxu0 0
    %1325 = vmatpush.bf16.msra.mxu0 0
    %1326 = vmatpush.bf16.msra.mxu0 0
    %1327 = vmatpush.bf16.msra.mxu0 0
    %1328 = vmatpush.bf16.msra.mxu0 0
    %1329 = vmatpush.bf16.msra.mxu0 0
    %1330 = vmatpush.bf16.msra.mxu0 %v358
    %1331 = vmatpush.bf16.msra.mxu0 %v357
    %1332 = vmatmul.bf16.gmra.mxu0 %v1288
    %v1333 = vpop.f32.mrf.mxu0
    %v1334 = vadd.f32 0.0, %v1333
    %v1335 = vpop.f32.mrf.mxu0
    %1336 = vdwg.mxu0
    %v1337 = vadd.f32 %v1323, %v1334
    %s1338 = sadd.s32 56, 192
    %s1339 = scalar_lea.vmem [#allocation2], %s1338
    %v1340 = vld [vmem:[%s1339] sm:$0xff]
    %1341 = vmatpush.bf16.msra.mxu0 0
    %1342 = vmatpush.bf16.msra.mxu0 0
    %1343 = vmatpush.bf16.msra.mxu0 0
    %1344 = vmatpush.bf16.msra.mxu0 0
    %1345 = vmatpush.bf16.msra.mxu0 0
    %1346 = vmatpush.bf16.msra.mxu0 0
    %1347 = vmatpush.bf16.msra.mxu0 %v387
    %1348 = vmatpush.bf16.msra.mxu0 %v386
    %1349 = vmatmul.bf16.gmra.mxu0 %v1288
    %v1350 = vpop.f32.mrf.mxu0
    %v1351 = vadd.f32 0.0, %v1350
    %v1352 = vpop.f32.mrf.mxu0
    %1353 = vdwg.mxu0
    %v1354 = vadd.f32 %v1340, %v1351
    %v1355 = vxor.u32 %v1303, 2147483648
    %v1356 = vmul.f32 %v1355, 1.442695
    %v1357 = vpow.pop %v1356
    %v1358 = vadd.f32 %v1357, 1.0
    %v1359 = vrcp.pop %v1358
    %v1360 = vmul.f32 %v1358, %v1359
    %v1361 = vsub.f32 1.0, %v1360
    %v1362 = vmul.f32 %v1359, %v1361
    %v1363 = vadd.f32 %v1359, %v1362
    %vm1364 = vweird.f32 %v1358
    %vm1365 = vweird.f32 %v1359
    %vm1366 = vmor %vm1364, %vm1365
    %v1367 = vsel %vm1366, %v1359, %v1363
    %v1368 = vand.u32 2147483647, %v1358
    %vm1369 = vcmp.eq.f32.partialorder %v1368, 8.507059e+37
    %v1370 = vand.u32 %v1358, 2147483648
    %v1371 = vor.u32 1.1754944e-38, %v1370
    %v1372 = vsel %vm1369, %v1371, %v1367
    %v1373 = vmul.f32 1.0, %v1372
    %v1374 = vxor.u32 %v1320, 2147483648
    %v1375 = vmul.f32 %v1374, 1.442695
    %v1376 = vpow.pop %v1375
    %v1377 = vadd.f32 %v1376, 1.0
    %v1378 = vrcp.pop %v1377
    %v1379 = vmul.f32 %v1377, %v1378
    %v1380 = vsub.f32 1.0, %v1379
    %v1381 = vmul.f32 %v1378, %v1380
    %v1382 = vadd.f32 %v1378, %v1381
    %vm1383 = vweird.f32 %v1377
    %vm1384 = vweird.f32 %v1378
    %vm1385 = vmor %vm1383, %vm1384
    %v1386 = vsel %vm1385, %v1378, %v1382
    %v1387 = vand.u32 2147483647, %v1377
    %vm1388 = vcmp.eq.f32.partialorder %v1387, 8.507059e+37
    %v1389 = vand.u32 %v1377, 2147483648
    %v1390 = vor.u32 1.1754944e-38, %v1389
    %v1391 = vsel %vm1388, %v1390, %v1386
    %v1392 = vmul.f32 1.0, %v1391
    %v1393 = vtanh.pop %v1337
    %v1394 = vxor.u32 %v1354, 2147483648
    %v1395 = vmul.f32 %v1394, 1.442695
    %v1396 = vpow.pop %v1395
    %v1397 = vadd.f32 %v1396, 1.0
    %v1398 = vrcp.pop %v1397
    %v1399 = vmul.f32 %v1397, %v1398
    %v1400 = vsub.f32 1.0, %v1399
    %v1401 = vmul.f32 %v1398, %v1400
    %v1402 = vadd.f32 %v1398, %v1401
    %vm1403 = vweird.f32 %v1397
    %vm1404 = vweird.f32 %v1398
    %vm1405 = vmor %vm1403, %vm1404
    %v1406 = vsel %vm1405, %v1398, %v1402
    %v1407 = vand.u32 2147483647, %v1397
    %vm1408 = vcmp.eq.f32.partialorder %v1407, 8.507059e+37
    %v1409 = vand.u32 %v1397, 2147483648
    %v1410 = vor.u32 1.1754944e-38, %v1409
    %v1411 = vsel %vm1408, %v1410, %v1406
    %v1412 = vmul.f32 1.0, %v1411
    %v1413 = vmul.f32 %v1392, %v1279
    %v1414 = vmul.f32 %v1373, %v1393
    %v1415 = vadd.f32 %v1413, %v1414
    %v1416 = vtanh.pop %v1415
    %v1417 = vmul.f32 %v1412, %v1416
    %s1418 = scalar_lea.vmem %s4, 56
    %1419 = vst.msk [vmem:[%s1418] sm:$0xff] %vm103, %v1417
    %1420 = vst.msk [vmem:[#allocation3] sm:$0xff] %vm103, %v1415
    // Predicated region
    $region18: #{lstm_encoder_forward.1} parent=1 // pred_check
      _
    $region19: #{lstm_encoder_forward.1} parent=1 // pred_check_branch
      %1422 = sbr.rel (0) target = $region21
    $region20: #{lstm_encoder_forward.1} parent=1 // pred_region
      _
    $region21: #{lstm_encoder_forward.1} parent=1 // pred_fallthru
      _
    // Predicated region
    $region22: #{lstm_encoder_forward.1} parent=1 // pred_check
      _
    $region23: #{lstm_encoder_forward.1} parent=1 // pred_check_branch
      %1424 = sbr.rel (0) target = $region25
    $region24: #{lstm_encoder_forward.1} parent=1 // pred_region
      %1426 = vsyncadd [#allocation4], 0
      %s1428 = sshll.u32 [#allocation3], 4
      %s1429 = int_to_ptr.vmem [resolvable:$true] %s1428
      %s1430 = sshll.u32 %s5, 4
      %s1431 = int_to_ptr.hbm [resolvable:$true] %s1430
      %1433 = dma.vmem_to_hbm [thread:$0]  %s1429, 128, %s1431, [#allocation4]
    $region25: #{lstm_encoder_forward.1} parent=1 // pred_fallthru
      _
    // Predicated region
    $region26: #{lstm_encoder_forward.1} parent=1 // pred_check
      _
    $region27: #{lstm_encoder_forward.1} parent=1 // pred_check_branch
      %1435 = sbr.rel (0) target = $region29
    $region28: #{lstm_encoder_forward.1} parent=1 // pred_region
      _
    $region29: #{lstm_encoder_forward.1} parent=1 // pred_fallthru
      _
    // Predicated region
    $region30: #{lstm_encoder_forward.1} parent=1 // pred_check
      _
    $region31: #{lstm_encoder_forward.1} parent=1 // pred_check_branch
      %1437 = sbr.rel (0) target = $region33
    $region32: #{lstm_encoder_forward.1} parent=1 // pred_region
      %1439 = dma.done [#allocation4], 128
    $region33: #{lstm_encoder_forward.1} parent=1 // pred_fallthru
      _
    %1440 = vsyncpa [#allocation4], 1

</llo_original>
